<compile_context>
chip_gen: v7x
topology: tpu7x:2x2x1
jax: 0.10.0
libtpu: 0.0.40
codegen_flags: <defaults>
</compile_context>

<pallas_src>
import functools

import jax
import jax.numpy as jnp
import numpy as np
from jax import lax
from jax.experimental import pallas as pl
from jax.experimental.pallas import tpu as pltpu

BETA = 0.95
THRESHOLD = 0.5
LANE = 128


def deep_snn_kernel(
    n_steps,
    x_ref,
    w1_ref, b1_ref,
    w2_ref, b2_ref,
    w3_ref, b3_ref,
    w4_ref, b4_ref,
    w5_ref, b5_ref,
    out_ref,            # (n_steps, bt, 2*NP): [t, :, :NP]=spk, [t, :, NP:]=mem
):
    B = x_ref.shape[0]
    H = w1_ref.shape[1]
    NP = w5_ref.shape[1]          # padded output width (multiple of 128)

    def lif_scan(cur_fn, width):
        """Sequential n_steps LIF recurrence (snnTorch Leaky, subtract reset).

        cur_fn(t) -> (B, width) input current for step t.
        Returns per-step spike and membrane lists (static unroll, n_steps=5).
        """
        m = jnp.zeros((B, width), jnp.float32)
        spikes, mems = [], []
        for t in range(n_steps):
            cur = cur_fn(t)
            m = BETA * m + cur - jnp.where(m > THRESHOLD, THRESHOLD, 0.0)
            s = jnp.where(m > THRESHOLD, 1.0, 0.0)
            spikes.append(s)
            mems.append(m)
        return spikes, mems

    # ---- Layer 1: current is identical every time step (static input) ------
    # One (B, n_input) @ (n_input, H) matmul total; bias added once.
    cur1 = jnp.dot(x_ref[...], w1_ref[...],
                   preferred_element_type=jnp.float32) + b1_ref[...]
    s_list, _ = lif_scan(lambda t: cur1, H)
    S = jnp.concatenate(s_list, axis=0)              # (n_steps*B, H), time-major

    # ---- Hidden layers 2-4: ONE time-batched matmul per layer --------------
    # (n_steps*B, H) @ (H, H), then a cheap per-step LIF scan on (B, H) vregs.
    # Dropout(0.3) between these layers -> identity (eval mode).
    for w_ref, b_ref in ((w2_ref, b2_ref), (w3_ref, b3_ref), (w4_ref, b4_ref)):
        cur = jnp.dot(S, w_ref[...],
                      preferred_element_type=jnp.float32) + b_ref[...]
        s_list, _ = lif_scan(lambda t, c=cur: c[t * B:(t + 1) * B], H)
        S = jnp.concatenate(s_list, axis=0)

    # ---- Output layer 5: time-batched matmul + LIF, lane-dense stores ------
    cur5 = jnp.dot(S, w5_ref[...],
                   preferred_element_type=jnp.float32) + b5_ref[...]
    s_list, m_list = lif_scan(lambda t, c=cur5: c[t * B:(t + 1) * B], NP)
    for t in range(n_steps):
        # Both halves are 128-lane aligned -> dense unmasked stores, no concat.
        out_ref[t, :, :NP] = s_list[t]
        out_ref[t, :, NP:] = m_list[t]


def deep_snn_forward(x, params, *, n_steps):
    """x: (B, n_input) f32. params: transposed weights (in, out), biases (1, out)."""
    B, n_input = x.shape
    n_hidden = params["w1"].shape[1]
    n_output = params["w5"].shape[1]
    npad = ((n_output + LANE - 1) // LANE) * LANE

    # Pad the output layer to a lane-dense 128-wide block.  Padded columns get
    # zero weight + zero bias, so their membrane stays exactly 0 and never
    # spikes; slicing below is exact.
    w5p = jnp.zeros((n_hidden, npad), jnp.float32).at[:, :n_output].set(params["w5"])
    b5p = jnp.zeros((1, npad), jnp.float32).at[:, :n_output].set(params["b5"])

    # Batch tiling: shard batch over a "parallel" grid axis (uses both
    # TensorCores on v7x when B is large; a single harmless step otherwise).
    assert B % 8 == 0, "batch must be a multiple of 8 sublanes"
    bt = B if B <= 128 else 128
    assert B % bt == 0
    nb = B // bt

    def const_spec(shape):
        # Whole (small) parameter resident in VMEM; same block every grid step.
        return pl.BlockSpec(shape, lambda i: (0,) * len(shape))

    flops = 2 * (B * n_input * n_hidden
                 + 3 * n_steps * B * n_hidden * n_hidden
                 + n_steps * B * n_hidden * npad)
    bytes_accessed = 4 * (B * n_input
                          + n_input * n_hidden + 3 * n_hidden * n_hidden
                          + n_hidden * npad + 4 * n_hidden + npad
                          + n_steps * B * 2 * npad)

    grid_spec = pltpu.PrefetchScalarGridSpec(
        num_scalar_prefetch=0,
        grid=(nb,),
        in_specs=[
            pl.BlockSpec((bt, n_input), lambda i: (i, 0)),
            const_spec((n_input, n_hidden)), const_spec((1, n_hidden)),
            const_spec((n_hidden, n_hidden)), const_spec((1, n_hidden)),
            const_spec((n_hidden, n_hidden)), const_spec((1, n_hidden)),
            const_spec((n_hidden, n_hidden)), const_spec((1, n_hidden)),
            const_spec((n_hidden, npad)), const_spec((1, npad)),
        ],
        out_specs=pl.BlockSpec((n_steps, bt, 2 * npad), lambda i: (0, i, 0)),
    )

    out = pl.pallas_call(
        functools.partial(deep_snn_kernel, n_steps),
        out_shape=jax.ShapeDtypeStruct((n_steps, B, 2 * npad), jnp.float32),
        grid_spec=grid_spec,
        compiler_params=pltpu.CompilerParams(
            dimension_semantics=("parallel",)),
        cost_estimate=pl.CostEstimate(
            flops=flops, transcendentals=0, bytes_accessed=bytes_accessed),
    )(
        x,
        params["w1"], params["b1"],
        params["w2"], params["b2"],
        params["w3"], params["b3"],
        params["w4"], params["b4"],
        w5p, b5p,
    )

    spk_rec = out[:, :, :n_output]
    mem_rec = out[:, :, npad:npad + n_output]
    return spk_rec, mem_rec


def _init_linear(key, fan_in, fan_out):
    """PyTorch nn.Linear default init: U(-1/sqrt(fan_in), 1/sqrt(fan_in))."""
    kw, kb = jax.random.split(key)
    bound = 1.0 / np.sqrt(fan_in)
    # PyTorch stores (out, in); we keep the transposed (in, out) layout for x @ W.
    w = jax.random.uniform(kw, (fan_in, fan_out), jnp.float32, -bound, bound)
    b = jax.random.uniform(kb, (1, fan_out), jnp.float32, -bound, bound)
    return w, b


def _reference_forward(x, params, n_steps):
    """Pure-JAX reference of the same forward (f32 HIGHEST-precision matmuls)."""
    B = x.shape[0]
    n_hidden = params["w1"].shape[1]
    n_output = params["w5"].shape[1]

    def lif(mem, cur):
        mem = BETA * mem + cur - jnp.where(mem > THRESHOLD, THRESHOLD, 0.0)
        spk = jnp.where(mem > THRESHOLD, 1.0, 0.0)
        return mem, spk

    def mm(a, w, b):
        return jnp.dot(a, w, precision=lax.Precision.HIGHEST,
                       preferred_element_type=jnp.float32) + b

    mems = [jnp.zeros((B, n_hidden), jnp.float32) for _ in range(4)]
    mems.append(jnp.zeros((B, n_output), jnp.float32))
    ws = [params["w1"], params["w2"], params["w3"], params["w4"], params["w5"]]
    bs = [params["b1"], params["b2"], params["b3"], params["b4"], params["b5"]]

    spk_rec, mem_rec = [], []
    for _ in range(n_steps):
        h = x
        new_mems = []
        for i in range(5):
            cur = mm(h, ws[i], bs[i])
            m, s = lif(mems[i], cur)
            new_mems.append(m)
            h = s
        mems = new_mems
        spk_rec.append(h)
        mem_rec.append(mems[-1])
    return jnp.stack(spk_rec), jnp.stack(mem_rec)


if __name__ == "__main__":
    # Small shapes consistent with the module's constructor (n_output=11 default).
    B = 8
    n_input = 32
    n_hidden = 128
    n_output = 11
    n_steps = 5

    key = jax.random.PRNGKey(0)
    kx, k1, k2, k3, k4, k5 = jax.random.split(key, 6)

    x = jax.random.normal(kx, (B, n_input), jnp.float32)

    w1, b1 = _init_linear(k1, n_input, n_hidden)
    w2, b2 = _init_linear(k2, n_hidden, n_hidden)
    w3, b3 = _init_linear(k3, n_hidden, n_hidden)
    w4, b4 = _init_linear(k4, n_hidden, n_hidden)
    w5, b5 = _init_linear(k5, n_hidden, n_output)
    params = dict(w1=w1, b1=b1, w2=w2, b2=b2, w3=w3, b3=b3, w4=w4, b4=b4,
                  w5=w5, b5=b5)

    fwd = jax.jit(functools.partial(deep_snn_forward, n_steps=n_steps))
    spk_rec, mem_rec = fwd(x, params)
    jax.block_until_ready((spk_rec, mem_rec))

    spk_ref, mem_ref = _reference_forward(x, params, n_steps)
    np.testing.assert_allclose(np.asarray(spk_rec), np.asarray(spk_ref), atol=1e-4)
    np.testing.assert_allclose(np.asarray(mem_rec), np.asarray(mem_ref), atol=1e-4)

    # TODO(synk): Dropout(0.3) is modelled as identity (eval mode); training-mode
    # stochastic dropout would need pltpu.prng_seed / prng_random_bits in-kernel.
    print("KERNEL_OK")
</pallas_src>

<mosaic_0001>
module attributes {stable_mosaic.version = 11 : i64} {
  func.func @deep_snn_kernel(%arg0: i32, %arg1: memref<8x32xf32, #tpu.memory_space<vmem>>, %arg2: memref<32x128xf32, #tpu.memory_space<vmem>>, %arg3: memref<1x128xf32, #tpu.memory_space<vmem>>, %arg4: memref<128x128xf32, #tpu.memory_space<vmem>>, %arg5: memref<1x128xf32, #tpu.memory_space<vmem>>, %arg6: memref<128x128xf32, #tpu.memory_space<vmem>>, %arg7: memref<1x128xf32, #tpu.memory_space<vmem>>, %arg8: memref<128x128xf32, #tpu.memory_space<vmem>>, %arg9: memref<1x128xf32, #tpu.memory_space<vmem>>, %arg10: memref<128x128xf32, #tpu.memory_space<vmem>>, %arg11: memref<1x128xf32, #tpu.memory_space<vmem>>, %arg12: memref<5x8x256xf32, #tpu.memory_space<vmem>>) attributes {dimension_semantics = [#tpu.dimension_semantics<parallel>], iteration_bounds = array<i64: 1>, scalar_prefetch = 0 : i64, scratch_operands = 0 : i64, tpu.core_type = #tpu.core_type<tc>, window_params = [{transform_indices = @transform_0, window_bounds = array<i64: 8, 32>}, {pipeline_mode = #tpu.pipeline_mode<synchronous>, transform_indices = @transform_1, window_bounds = array<i64: 32, 128>}, {pipeline_mode = #tpu.pipeline_mode<synchronous>, transform_indices = @transform_2, window_bounds = array<i64: 1, 128>}, {pipeline_mode = #tpu.pipeline_mode<synchronous>, transform_indices = @transform_3, window_bounds = array<i64: 128, 128>}, {pipeline_mode = #tpu.pipeline_mode<synchronous>, transform_indices = @transform_4, window_bounds = array<i64: 1, 128>}, {pipeline_mode = #tpu.pipeline_mode<synchronous>, transform_indices = @transform_5, window_bounds = array<i64: 128, 128>}, {pipeline_mode = #tpu.pipeline_mode<synchronous>, transform_indices = @transform_6, window_bounds = array<i64: 1, 128>}, {pipeline_mode = #tpu.pipeline_mode<synchronous>, transform_indices = @transform_7, window_bounds = array<i64: 128, 128>}, {pipeline_mode = #tpu.pipeline_mode<synchronous>, transform_indices = @transform_8, window_bounds = array<i64: 1, 128>}, {pipeline_mode = #tpu.pipeline_mode<synchronous>, transform_indices = @transform_9, window_bounds = array<i64: 128, 128>}, {pipeline_mode = #tpu.pipeline_mode<synchronous>, transform_indices = @transform_10, window_bounds = array<i64: 1, 128>}, {transform_indices = @transform_11, window_bounds = array<i64: 5, 8, 256>}]} {
    %c0 = arith.constant 0 : index
    %c0_0 = arith.constant 0 : index
    %0 = vector.load %arg1[%c0, %c0_0] : memref<8x32xf32, #tpu.memory_space<vmem>>, vector<8x32xf32>
    %c0_1 = arith.constant 0 : index
    %c0_2 = arith.constant 0 : index
    %1 = vector.load %arg2[%c0_1, %c0_2] : memref<32x128xf32, #tpu.memory_space<vmem>>, vector<32x128xf32>
    %cst = arith.constant dense<0.000000e+00> : vector<8x128xf32>
    %2 = tpu.matmul %0, %1, %cst {dimension_numbers = #tpu.dot_dimension_numbers<[1], [0], [0], [1], [0, 0, 1, 1], [], []>} : vector<8x32xf32>, vector<32x128xf32>, vector<8x128xf32> -> vector<8x128xf32>
    %c0_3 = arith.constant 0 : index
    %c0_4 = arith.constant 0 : index
    %3 = vector.load %arg3[%c0_3, %c0_4] : memref<1x128xf32, #tpu.memory_space<vmem>>, vector<1x128xf32>
    %4 = vector.broadcast %3 : vector<1x128xf32> to vector<8x128xf32>
    %5 = arith.addf %2, %4 : vector<8x128xf32>
    %cst_5 = arith.constant 0.000000e+00 : f32
    %6 = vector.broadcast %cst_5 : f32 to vector<8x128xf32>
    %cst_6 = arith.constant 0.949999988 : f32
    %7 = vector.broadcast %cst_6 : f32 to vector<8x128xf32>
    %8 = arith.mulf %7, %6 : vector<8x128xf32>
    %9 = arith.addf %8, %5 : vector<8x128xf32>
    %cst_7 = arith.constant 5.000000e-01 : f32
    %10 = vector.broadcast %cst_7 : f32 to vector<8x128xf32>
    %11 = arith.cmpf ogt, %6, %10 : vector<8x128xf32>
    %cst_8 = arith.constant 5.000000e-01 : f32
    %cst_9 = arith.constant 0.000000e+00 : f32
    %12 = vector.broadcast %cst_8 : f32 to vector<8x128xf32>
    %13 = vector.broadcast %cst_9 : f32 to vector<8x128xf32>
    %14 = arith.select %11, %12, %13 : vector<8x128xi1>, vector<8x128xf32>
    %15 = arith.subf %9, %14 : vector<8x128xf32>
    %cst_10 = arith.constant 5.000000e-01 : f32
    %16 = vector.broadcast %cst_10 : f32 to vector<8x128xf32>
    %17 = arith.cmpf ogt, %15, %16 : vector<8x128xf32>
    %cst_11 = arith.constant 1.000000e+00 : f32
    %cst_12 = arith.constant 0.000000e+00 : f32
    %18 = vector.broadcast %cst_11 : f32 to vector<8x128xf32>
    %19 = vector.broadcast %cst_12 : f32 to vector<8x128xf32>
    %20 = arith.select %17, %18, %19 : vector<8x128xi1>, vector<8x128xf32>
    %cst_13 = arith.constant 0.949999988 : f32
    %21 = vector.broadcast %cst_13 : f32 to vector<8x128xf32>
    %22 = arith.mulf %21, %15 : vector<8x128xf32>
    %23 = arith.addf %22, %5 : vector<8x128xf32>
    %cst_14 = arith.constant 5.000000e-01 : f32
    %24 = vector.broadcast %cst_14 : f32 to vector<8x128xf32>
    %25 = arith.cmpf ogt, %15, %24 : vector<8x128xf32>
    %cst_15 = arith.constant 5.000000e-01 : f32
    %cst_16 = arith.constant 0.000000e+00 : f32
    %26 = vector.broadcast %cst_15 : f32 to vector<8x128xf32>
    %27 = vector.broadcast %cst_16 : f32 to vector<8x128xf32>
    %28 = arith.select %25, %26, %27 : vector<8x128xi1>, vector<8x128xf32>
    %29 = arith.subf %23, %28 : vector<8x128xf32>
    %cst_17 = arith.constant 5.000000e-01 : f32
    %30 = vector.broadcast %cst_17 : f32 to vector<8x128xf32>
    %31 = arith.cmpf ogt, %29, %30 : vector<8x128xf32>
    %cst_18 = arith.constant 1.000000e+00 : f32
    %cst_19 = arith.constant 0.000000e+00 : f32
    %32 = vector.broadcast %cst_18 : f32 to vector<8x128xf32>
    %33 = vector.broadcast %cst_19 : f32 to vector<8x128xf32>
    %34 = arith.select %31, %32, %33 : vector<8x128xi1>, vector<8x128xf32>
    %cst_20 = arith.constant 0.949999988 : f32
    %35 = vector.broadcast %cst_20 : f32 to vector<8x128xf32>
    %36 = arith.mulf %35, %29 : vector<8x128xf32>
    %37 = arith.addf %36, %5 : vector<8x128xf32>
    %cst_21 = arith.constant 5.000000e-01 : f32
    %38 = vector.broadcast %cst_21 : f32 to vector<8x128xf32>
    %39 = arith.cmpf ogt, %29, %38 : vector<8x128xf32>
    %cst_22 = arith.constant 5.000000e-01 : f32
    %cst_23 = arith.constant 0.000000e+00 : f32
    %40 = vector.broadcast %cst_22 : f32 to vector<8x128xf32>
    %41 = vector.broadcast %cst_23 : f32 to vector<8x128xf32>
    %42 = arith.select %39, %40, %41 : vector<8x128xi1>, vector<8x128xf32>
    %43 = arith.subf %37, %42 : vector<8x128xf32>
    %cst_24 = arith.constant 5.000000e-01 : f32
    %44 = vector.broadcast %cst_24 : f32 to vector<8x128xf32>
    %45 = arith.cmpf ogt, %43, %44 : vector<8x128xf32>
    %cst_25 = arith.constant 1.000000e+00 : f32
    %cst_26 = arith.constant 0.000000e+00 : f32
    %46 = vector.broadcast %cst_25 : f32 to vector<8x128xf32>
    %47 = vector.broadcast %cst_26 : f32 to vector<8x128xf32>
    %48 = arith.select %45, %46, %47 : vector<8x128xi1>, vector<8x128xf32>
    %cst_27 = arith.constant 0.949999988 : f32
    %49 = vector.broadcast %cst_27 : f32 to vector<8x128xf32>
    %50 = arith.mulf %49, %43 : vector<8x128xf32>
    %51 = arith.addf %50, %5 : vector<8x128xf32>
    %cst_28 = arith.constant 5.000000e-01 : f32
    %52 = vector.broadcast %cst_28 : f32 to vector<8x128xf32>
    %53 = arith.cmpf ogt, %43, %52 : vector<8x128xf32>
    %cst_29 = arith.constant 5.000000e-01 : f32
    %cst_30 = arith.constant 0.000000e+00 : f32
    %54 = vector.broadcast %cst_29 : f32 to vector<8x128xf32>
    %55 = vector.broadcast %cst_30 : f32 to vector<8x128xf32>
    %56 = arith.select %53, %54, %55 : vector<8x128xi1>, vector<8x128xf32>
    %57 = arith.subf %51, %56 : vector<8x128xf32>
    %cst_31 = arith.constant 5.000000e-01 : f32
    %58 = vector.broadcast %cst_31 : f32 to vector<8x128xf32>
    %59 = arith.cmpf ogt, %57, %58 : vector<8x128xf32>
    %cst_32 = arith.constant 1.000000e+00 : f32
    %cst_33 = arith.constant 0.000000e+00 : f32
    %60 = vector.broadcast %cst_32 : f32 to vector<8x128xf32>
    %61 = vector.broadcast %cst_33 : f32 to vector<8x128xf32>
    %62 = arith.select %59, %60, %61 : vector<8x128xi1>, vector<8x128xf32>
    %cst_34 = arith.constant 0.949999988 : f32
    %63 = vector.broadcast %cst_34 : f32 to vector<8x128xf32>
    %64 = arith.mulf %63, %57 : vector<8x128xf32>
    %65 = arith.addf %64, %5 : vector<8x128xf32>
    %cst_35 = arith.constant 5.000000e-01 : f32
    %66 = vector.broadcast %cst_35 : f32 to vector<8x128xf32>
    %67 = arith.cmpf ogt, %57, %66 : vector<8x128xf32>
    %cst_36 = arith.constant 5.000000e-01 : f32
    %cst_37 = arith.constant 0.000000e+00 : f32
    %68 = vector.broadcast %cst_36 : f32 to vector<8x128xf32>
    %69 = vector.broadcast %cst_37 : f32 to vector<8x128xf32>
    %70 = arith.select %67, %68, %69 : vector<8x128xi1>, vector<8x128xf32>
    %71 = arith.subf %65, %70 : vector<8x128xf32>
    %cst_38 = arith.constant 5.000000e-01 : f32
    %72 = vector.broadcast %cst_38 : f32 to vector<8x128xf32>
    %73 = arith.cmpf ogt, %71, %72 : vector<8x128xf32>
    %cst_39 = arith.constant 1.000000e+00 : f32
    %cst_40 = arith.constant 0.000000e+00 : f32
    %74 = vector.broadcast %cst_39 : f32 to vector<8x128xf32>
    %75 = vector.broadcast %cst_40 : f32 to vector<8x128xf32>
    %76 = arith.select %73, %74, %75 : vector<8x128xi1>, vector<8x128xf32>
    %77 = tpu.concatenate %20, %34, %48, %62, %76 in 0 : vector<8x128xf32>, vector<8x128xf32>, vector<8x128xf32>, vector<8x128xf32>, vector<8x128xf32> -> vector<40x128xf32>
    %c0_41 = arith.constant 0 : index
    %c0_42 = arith.constant 0 : index
    %78 = vector.load %arg4[%c0_41, %c0_42] : memref<128x128xf32, #tpu.memory_space<vmem>>, vector<128x128xf32>
    %cst_43 = arith.constant dense<0.000000e+00> : vector<40x128xf32>
    %79 = tpu.matmul %77, %78, %cst_43 {dimension_numbers = #tpu.dot_dimension_numbers<[1], [0], [0], [1], [0, 0, 1, 1], [], []>} : vector<40x128xf32>, vector<128x128xf32>, vector<40x128xf32> -> vector<40x128xf32>
    %c0_44 = arith.constant 0 : index
    %c0_45 = arith.constant 0 : index
    %80 = vector.load %arg5[%c0_44, %c0_45] : memref<1x128xf32, #tpu.memory_space<vmem>>, vector<1x128xf32>
    %81 = vector.broadcast %80 : vector<1x128xf32> to vector<40x128xf32>
    %82 = arith.addf %79, %81 : vector<40x128xf32>
    %cst_46 = arith.constant 0.000000e+00 : f32
    %83 = vector.broadcast %cst_46 : f32 to vector<8x128xf32>
    %84 = vector.extract_strided_slice %82 {offsets = [0, 0], sizes = [8, 128], strides = [1, 1]} : vector<40x128xf32> to vector<8x128xf32>
    %cst_47 = arith.constant 0.949999988 : f32
    %85 = vector.broadcast %cst_47 : f32 to vector<8x128xf32>
    %86 = arith.mulf %85, %83 : vector<8x128xf32>
    %87 = arith.addf %86, %84 : vector<8x128xf32>
    %cst_48 = arith.constant 5.000000e-01 : f32
    %88 = vector.broadcast %cst_48 : f32 to vector<8x128xf32>
    %89 = arith.cmpf ogt, %83, %88 : vector<8x128xf32>
    %cst_49 = arith.constant 5.000000e-01 : f32
    %cst_50 = arith.constant 0.000000e+00 : f32
    %90 = vector.broadcast %cst_49 : f32 to vector<8x128xf32>
    %91 = vector.broadcast %cst_50 : f32 to vector<8x128xf32>
    %92 = arith.select %89, %90, %91 : vector<8x128xi1>, vector<8x128xf32>
    %93 = arith.subf %87, %92 : vector<8x128xf32>
    %cst_51 = arith.constant 5.000000e-01 : f32
    %94 = vector.broadcast %cst_51 : f32 to vector<8x128xf32>
    %95 = arith.cmpf ogt, %93, %94 : vector<8x128xf32>
    %cst_52 = arith.constant 1.000000e+00 : f32
    %cst_53 = arith.constant 0.000000e+00 : f32
    %96 = vector.broadcast %cst_52 : f32 to vector<8x128xf32>
    %97 = vector.broadcast %cst_53 : f32 to vector<8x128xf32>
    %98 = arith.select %95, %96, %97 : vector<8x128xi1>, vector<8x128xf32>
    %99 = vector.extract_strided_slice %82 {offsets = [8, 0], sizes = [8, 128], strides = [1, 1]} : vector<40x128xf32> to vector<8x128xf32>
    %cst_54 = arith.constant 0.949999988 : f32
    %100 = vector.broadcast %cst_54 : f32 to vector<8x128xf32>
    %101 = arith.mulf %100, %93 : vector<8x128xf32>
    %102 = arith.addf %101, %99 : vector<8x128xf32>
    %cst_55 = arith.constant 5.000000e-01 : f32
    %103 = vector.broadcast %cst_55 : f32 to vector<8x128xf32>
    %104 = arith.cmpf ogt, %93, %103 : vector<8x128xf32>
    %cst_56 = arith.constant 5.000000e-01 : f32
    %cst_57 = arith.constant 0.000000e+00 : f32
    %105 = vector.broadcast %cst_56 : f32 to vector<8x128xf32>
    %106 = vector.broadcast %cst_57 : f32 to vector<8x128xf32>
    %107 = arith.select %104, %105, %106 : vector<8x128xi1>, vector<8x128xf32>
    %108 = arith.subf %102, %107 : vector<8x128xf32>
    %cst_58 = arith.constant 5.000000e-01 : f32
    %109 = vector.broadcast %cst_58 : f32 to vector<8x128xf32>
    %110 = arith.cmpf ogt, %108, %109 : vector<8x128xf32>
    %cst_59 = arith.constant 1.000000e+00 : f32
    %cst_60 = arith.constant 0.000000e+00 : f32
    %111 = vector.broadcast %cst_59 : f32 to vector<8x128xf32>
    %112 = vector.broadcast %cst_60 : f32 to vector<8x128xf32>
    %113 = arith.select %110, %111, %112 : vector<8x128xi1>, vector<8x128xf32>
    %114 = vector.extract_strided_slice %82 {offsets = [16, 0], sizes = [8, 128], strides = [1, 1]} : vector<40x128xf32> to vector<8x128xf32>
    %cst_61 = arith.constant 0.949999988 : f32
    %115 = vector.broadcast %cst_61 : f32 to vector<8x128xf32>
    %116 = arith.mulf %115, %108 : vector<8x128xf32>
    %117 = arith.addf %116, %114 : vector<8x128xf32>
    %cst_62 = arith.constant 5.000000e-01 : f32
    %118 = vector.broadcast %cst_62 : f32 to vector<8x128xf32>
    %119 = arith.cmpf ogt, %108, %118 : vector<8x128xf32>
    %cst_63 = arith.constant 5.000000e-01 : f32
    %cst_64 = arith.constant 0.000000e+00 : f32
    %120 = vector.broadcast %cst_63 : f32 to vector<8x128xf32>
    %121 = vector.broadcast %cst_64 : f32 to vector<8x128xf32>
    %122 = arith.select %119, %120, %121 : vector<8x128xi1>, vector<8x128xf32>
    %123 = arith.subf %117, %122 : vector<8x128xf32>
    %cst_65 = arith.constant 5.000000e-01 : f32
    %124 = vector.broadcast %cst_65 : f32 to vector<8x128xf32>
    %125 = arith.cmpf ogt, %123, %124 : vector<8x128xf32>
    %cst_66 = arith.constant 1.000000e+00 : f32
    %cst_67 = arith.constant 0.000000e+00 : f32
    %126 = vector.broadcast %cst_66 : f32 to vector<8x128xf32>
    %127 = vector.broadcast %cst_67 : f32 to vector<8x128xf32>
    %128 = arith.select %125, %126, %127 : vector<8x128xi1>, vector<8x128xf32>
    %129 = vector.extract_strided_slice %82 {offsets = [24, 0], sizes = [8, 128], strides = [1, 1]} : vector<40x128xf32> to vector<8x128xf32>
    %cst_68 = arith.constant 0.949999988 : f32
    %130 = vector.broadcast %cst_68 : f32 to vector<8x128xf32>
    %131 = arith.mulf %130, %123 : vector<8x128xf32>
    %132 = arith.addf %131, %129 : vector<8x128xf32>
    %cst_69 = arith.constant 5.000000e-01 : f32
    %133 = vector.broadcast %cst_69 : f32 to vector<8x128xf32>
    %134 = arith.cmpf ogt, %123, %133 : vector<8x128xf32>
    %cst_70 = arith.constant 5.000000e-01 : f32
    %cst_71 = arith.constant 0.000000e+00 : f32
    %135 = vector.broadcast %cst_70 : f32 to vector<8x128xf32>
    %136 = vector.broadcast %cst_71 : f32 to vector<8x128xf32>
    %137 = arith.select %134, %135, %136 : vector<8x128xi1>, vector<8x128xf32>
    %138 = arith.subf %132, %137 : vector<8x128xf32>
    %cst_72 = arith.constant 5.000000e-01 : f32
    %139 = vector.broadcast %cst_72 : f32 to vector<8x128xf32>
    %140 = arith.cmpf ogt, %138, %139 : vector<8x128xf32>
    %cst_73 = arith.constant 1.000000e+00 : f32
    %cst_74 = arith.constant 0.000000e+00 : f32
    %141 = vector.broadcast %cst_73 : f32 to vector<8x128xf32>
    %142 = vector.broadcast %cst_74 : f32 to vector<8x128xf32>
    %143 = arith.select %140, %141, %142 : vector<8x128xi1>, vector<8x128xf32>
    %144 = vector.extract_strided_slice %82 {offsets = [32, 0], sizes = [8, 128], strides = [1, 1]} : vector<40x128xf32> to vector<8x128xf32>
    %cst_75 = arith.constant 0.949999988 : f32
    %145 = vector.broadcast %cst_75 : f32 to vector<8x128xf32>
    %146 = arith.mulf %145, %138 : vector<8x128xf32>
    %147 = arith.addf %146, %144 : vector<8x128xf32>
    %cst_76 = arith.constant 5.000000e-01 : f32
    %148 = vector.broadcast %cst_76 : f32 to vector<8x128xf32>
    %149 = arith.cmpf ogt, %138, %148 : vector<8x128xf32>
    %cst_77 = arith.constant 5.000000e-01 : f32
    %cst_78 = arith.constant 0.000000e+00 : f32
    %150 = vector.broadcast %cst_77 : f32 to vector<8x128xf32>
    %151 = vector.broadcast %cst_78 : f32 to vector<8x128xf32>
    %152 = arith.select %149, %150, %151 : vector<8x128xi1>, vector<8x128xf32>
    %153 = arith.subf %147, %152 : vector<8x128xf32>
    %cst_79 = arith.constant 5.000000e-01 : f32
    %154 = vector.broadcast %cst_79 : f32 to vector<8x128xf32>
    %155 = arith.cmpf ogt, %153, %154 : vector<8x128xf32>
    %cst_80 = arith.constant 1.000000e+00 : f32
    %cst_81 = arith.constant 0.000000e+00 : f32
    %156 = vector.broadcast %cst_80 : f32 to vector<8x128xf32>
    %157 = vector.broadcast %cst_81 : f32 to vector<8x128xf32>
    %158 = arith.select %155, %156, %157 : vector<8x128xi1>, vector<8x128xf32>
    %159 = tpu.concatenate %98, %113, %128, %143, %158 in 0 : vector<8x128xf32>, vector<8x128xf32>, vector<8x128xf32>, vector<8x128xf32>, vector<8x128xf32> -> vector<40x128xf32>
    %c0_82 = arith.constant 0 : index
    %c0_83 = arith.constant 0 : index
    %160 = vector.load %arg6[%c0_82, %c0_83] : memref<128x128xf32, #tpu.memory_space<vmem>>, vector<128x128xf32>
    %cst_84 = arith.constant dense<0.000000e+00> : vector<40x128xf32>
    %161 = tpu.matmul %159, %160, %cst_84 {dimension_numbers = #tpu.dot_dimension_numbers<[1], [0], [0], [1], [0, 0, 1, 1], [], []>} : vector<40x128xf32>, vector<128x128xf32>, vector<40x128xf32> -> vector<40x128xf32>
    %c0_85 = arith.constant 0 : index
    %c0_86 = arith.constant 0 : index
    %162 = vector.load %arg7[%c0_85, %c0_86] : memref<1x128xf32, #tpu.memory_space<vmem>>, vector<1x128xf32>
    %163 = vector.broadcast %162 : vector<1x128xf32> to vector<40x128xf32>
    %164 = arith.addf %161, %163 : vector<40x128xf32>
    %cst_87 = arith.constant 0.000000e+00 : f32
    %165 = vector.broadcast %cst_87 : f32 to vector<8x128xf32>
    %166 = vector.extract_strided_slice %164 {offsets = [0, 0], sizes = [8, 128], strides = [1, 1]} : vector<40x128xf32> to vector<8x128xf32>
    %cst_88 = arith.constant 0.949999988 : f32
    %167 = vector.broadcast %cst_88 : f32 to vector<8x128xf32>
    %168 = arith.mulf %167, %165 : vector<8x128xf32>
    %169 = arith.addf %168, %166 : vector<8x128xf32>
    %cst_89 = arith.constant 5.000000e-01 : f32
    %170 = vector.broadcast %cst_89 : f32 to vector<8x128xf32>
    %171 = arith.cmpf ogt, %165, %170 : vector<8x128xf32>
    %cst_90 = arith.constant 5.000000e-01 : f32
    %cst_91 = arith.constant 0.000000e+00 : f32
    %172 = vector.broadcast %cst_90 : f32 to vector<8x128xf32>
    %173 = vector.broadcast %cst_91 : f32 to vector<8x128xf32>
    %174 = arith.select %171, %172, %173 : vector<8x128xi1>, vector<8x128xf32>
    %175 = arith.subf %169, %174 : vector<8x128xf32>
    %cst_92 = arith.constant 5.000000e-01 : f32
    %176 = vector.broadcast %cst_92 : f32 to vector<8x128xf32>
    %177 = arith.cmpf ogt, %175, %176 : vector<8x128xf32>
    %cst_93 = arith.constant 1.000000e+00 : f32
    %cst_94 = arith.constant 0.000000e+00 : f32
    %178 = vector.broadcast %cst_93 : f32 to vector<8x128xf32>
    %179 = vector.broadcast %cst_94 : f32 to vector<8x128xf32>
    %180 = arith.select %177, %178, %179 : vector<8x128xi1>, vector<8x128xf32>
    %181 = vector.extract_strided_slice %164 {offsets = [8, 0], sizes = [8, 128], strides = [1, 1]} : vector<40x128xf32> to vector<8x128xf32>
    %cst_95 = arith.constant 0.949999988 : f32
    %182 = vector.broadcast %cst_95 : f32 to vector<8x128xf32>
    %183 = arith.mulf %182, %175 : vector<8x128xf32>
    %184 = arith.addf %183, %181 : vector<8x128xf32>
    %cst_96 = arith.constant 5.000000e-01 : f32
    %185 = vector.broadcast %cst_96 : f32 to vector<8x128xf32>
    %186 = arith.cmpf ogt, %175, %185 : vector<8x128xf32>
    %cst_97 = arith.constant 5.000000e-01 : f32
    %cst_98 = arith.constant 0.000000e+00 : f32
    %187 = vector.broadcast %cst_97 : f32 to vector<8x128xf32>
    %188 = vector.broadcast %cst_98 : f32 to vector<8x128xf32>
    %189 = arith.select %186, %187, %188 : vector<8x128xi1>, vector<8x128xf32>
    %190 = arith.subf %184, %189 : vector<8x128xf32>
    %cst_99 = arith.constant 5.000000e-01 : f32
    %191 = vector.broadcast %cst_99 : f32 to vector<8x128xf32>
    %192 = arith.cmpf ogt, %190, %191 : vector<8x128xf32>
    %cst_100 = arith.constant 1.000000e+00 : f32
    %cst_101 = arith.constant 0.000000e+00 : f32
    %193 = vector.broadcast %cst_100 : f32 to vector<8x128xf32>
    %194 = vector.broadcast %cst_101 : f32 to vector<8x128xf32>
    %195 = arith.select %192, %193, %194 : vector<8x128xi1>, vector<8x128xf32>
    %196 = vector.extract_strided_slice %164 {offsets = [16, 0], sizes = [8, 128], strides = [1, 1]} : vector<40x128xf32> to vector<8x128xf32>
    %cst_102 = arith.constant 0.949999988 : f32
    %197 = vector.broadcast %cst_102 : f32 to vector<8x128xf32>
    %198 = arith.mulf %197, %190 : vector<8x128xf32>
    %199 = arith.addf %198, %196 : vector<8x128xf32>
    %cst_103 = arith.constant 5.000000e-01 : f32
    %200 = vector.broadcast %cst_103 : f32 to vector<8x128xf32>
    %201 = arith.cmpf ogt, %190, %200 : vector<8x128xf32>
    %cst_104 = arith.constant 5.000000e-01 : f32
    %cst_105 = arith.constant 0.000000e+00 : f32
    %202 = vector.broadcast %cst_104 : f32 to vector<8x128xf32>
    %203 = vector.broadcast %cst_105 : f32 to vector<8x128xf32>
    %204 = arith.select %201, %202, %203 : vector<8x128xi1>, vector<8x128xf32>
    %205 = arith.subf %199, %204 : vector<8x128xf32>
    %cst_106 = arith.constant 5.000000e-01 : f32
    %206 = vector.broadcast %cst_106 : f32 to vector<8x128xf32>
    %207 = arith.cmpf ogt, %205, %206 : vector<8x128xf32>
    %cst_107 = arith.constant 1.000000e+00 : f32
    %cst_108 = arith.constant 0.000000e+00 : f32
    %208 = vector.broadcast %cst_107 : f32 to vector<8x128xf32>
    %209 = vector.broadcast %cst_108 : f32 to vector<8x128xf32>
    %210 = arith.select %207, %208, %209 : vector<8x128xi1>, vector<8x128xf32>
    %211 = vector.extract_strided_slice %164 {offsets = [24, 0], sizes = [8, 128], strides = [1, 1]} : vector<40x128xf32> to vector<8x128xf32>
    %cst_109 = arith.constant 0.949999988 : f32
    %212 = vector.broadcast %cst_109 : f32 to vector<8x128xf32>
    %213 = arith.mulf %212, %205 : vector<8x128xf32>
    %214 = arith.addf %213, %211 : vector<8x128xf32>
    %cst_110 = arith.constant 5.000000e-01 : f32
    %215 = vector.broadcast %cst_110 : f32 to vector<8x128xf32>
    %216 = arith.cmpf ogt, %205, %215 : vector<8x128xf32>
    %cst_111 = arith.constant 5.000000e-01 : f32
    %cst_112 = arith.constant 0.000000e+00 : f32
    %217 = vector.broadcast %cst_111 : f32 to vector<8x128xf32>
    %218 = vector.broadcast %cst_112 : f32 to vector<8x128xf32>
    %219 = arith.select %216, %217, %218 : vector<8x128xi1>, vector<8x128xf32>
    %220 = arith.subf %214, %219 : vector<8x128xf32>
    %cst_113 = arith.constant 5.000000e-01 : f32
    %221 = vector.broadcast %cst_113 : f32 to vector<8x128xf32>
    %222 = arith.cmpf ogt, %220, %221 : vector<8x128xf32>
    %cst_114 = arith.constant 1.000000e+00 : f32
    %cst_115 = arith.constant 0.000000e+00 : f32
    %223 = vector.broadcast %cst_114 : f32 to vector<8x128xf32>
    %224 = vector.broadcast %cst_115 : f32 to vector<8x128xf32>
    %225 = arith.select %222, %223, %224 : vector<8x128xi1>, vector<8x128xf32>
    %226 = vector.extract_strided_slice %164 {offsets = [32, 0], sizes = [8, 128], strides = [1, 1]} : vector<40x128xf32> to vector<8x128xf32>
    %cst_116 = arith.constant 0.949999988 : f32
    %227 = vector.broadcast %cst_116 : f32 to vector<8x128xf32>
    %228 = arith.mulf %227, %220 : vector<8x128xf32>
    %229 = arith.addf %228, %226 : vector<8x128xf32>
    %cst_117 = arith.constant 5.000000e-01 : f32
    %230 = vector.broadcast %cst_117 : f32 to vector<8x128xf32>
    %231 = arith.cmpf ogt, %220, %230 : vector<8x128xf32>
    %cst_118 = arith.constant 5.000000e-01 : f32
    %cst_119 = arith.constant 0.000000e+00 : f32
    %232 = vector.broadcast %cst_118 : f32 to vector<8x128xf32>
    %233 = vector.broadcast %cst_119 : f32 to vector<8x128xf32>
    %234 = arith.select %231, %232, %233 : vector<8x128xi1>, vector<8x128xf32>
    %235 = arith.subf %229, %234 : vector<8x128xf32>
    %cst_120 = arith.constant 5.000000e-01 : f32
    %236 = vector.broadcast %cst_120 : f32 to vector<8x128xf32>
    %237 = arith.cmpf ogt, %235, %236 : vector<8x128xf32>
    %cst_121 = arith.constant 1.000000e+00 : f32
    %cst_122 = arith.constant 0.000000e+00 : f32
    %238 = vector.broadcast %cst_121 : f32 to vector<8x128xf32>
    %239 = vector.broadcast %cst_122 : f32 to vector<8x128xf32>
    %240 = arith.select %237, %238, %239 : vector<8x128xi1>, vector<8x128xf32>
    %241 = tpu.concatenate %180, %195, %210, %225, %240 in 0 : vector<8x128xf32>, vector<8x128xf32>, vector<8x128xf32>, vector<8x128xf32>, vector<8x128xf32> -> vector<40x128xf32>
    %c0_123 = arith.constant 0 : index
    %c0_124 = arith.constant 0 : index
    %242 = vector.load %arg8[%c0_123, %c0_124] : memref<128x128xf32, #tpu.memory_space<vmem>>, vector<128x128xf32>
    %cst_125 = arith.constant dense<0.000000e+00> : vector<40x128xf32>
    %243 = tpu.matmul %241, %242, %cst_125 {dimension_numbers = #tpu.dot_dimension_numbers<[1], [0], [0], [1], [0, 0, 1, 1], [], []>} : vector<40x128xf32>, vector<128x128xf32>, vector<40x128xf32> -> vector<40x128xf32>
    %c0_126 = arith.constant 0 : index
    %c0_127 = arith.constant 0 : index
    %244 = vector.load %arg9[%c0_126, %c0_127] : memref<1x128xf32, #tpu.memory_space<vmem>>, vector<1x128xf32>
    %245 = vector.broadcast %244 : vector<1x128xf32> to vector<40x128xf32>
    %246 = arith.addf %243, %245 : vector<40x128xf32>
    %cst_128 = arith.constant 0.000000e+00 : f32
    %247 = vector.broadcast %cst_128 : f32 to vector<8x128xf32>
    %248 = vector.extract_strided_slice %246 {offsets = [0, 0], sizes = [8, 128], strides = [1, 1]} : vector<40x128xf32> to vector<8x128xf32>
    %cst_129 = arith.constant 0.949999988 : f32
    %249 = vector.broadcast %cst_129 : f32 to vector<8x128xf32>
    %250 = arith.mulf %249, %247 : vector<8x128xf32>
    %251 = arith.addf %250, %248 : vector<8x128xf32>
    %cst_130 = arith.constant 5.000000e-01 : f32
    %252 = vector.broadcast %cst_130 : f32 to vector<8x128xf32>
    %253 = arith.cmpf ogt, %247, %252 : vector<8x128xf32>
    %cst_131 = arith.constant 5.000000e-01 : f32
    %cst_132 = arith.constant 0.000000e+00 : f32
    %254 = vector.broadcast %cst_131 : f32 to vector<8x128xf32>
    %255 = vector.broadcast %cst_132 : f32 to vector<8x128xf32>
    %256 = arith.select %253, %254, %255 : vector<8x128xi1>, vector<8x128xf32>
    %257 = arith.subf %251, %256 : vector<8x128xf32>
    %cst_133 = arith.constant 5.000000e-01 : f32
    %258 = vector.broadcast %cst_133 : f32 to vector<8x128xf32>
    %259 = arith.cmpf ogt, %257, %258 : vector<8x128xf32>
    %cst_134 = arith.constant 1.000000e+00 : f32
    %cst_135 = arith.constant 0.000000e+00 : f32
    %260 = vector.broadcast %cst_134 : f32 to vector<8x128xf32>
    %261 = vector.broadcast %cst_135 : f32 to vector<8x128xf32>
    %262 = arith.select %259, %260, %261 : vector<8x128xi1>, vector<8x128xf32>
    %263 = vector.extract_strided_slice %246 {offsets = [8, 0], sizes = [8, 128], strides = [1, 1]} : vector<40x128xf32> to vector<8x128xf32>
    %cst_136 = arith.constant 0.949999988 : f32
    %264 = vector.broadcast %cst_136 : f32 to vector<8x128xf32>
    %265 = arith.mulf %264, %257 : vector<8x128xf32>
    %266 = arith.addf %265, %263 : vector<8x128xf32>
    %cst_137 = arith.constant 5.000000e-01 : f32
    %267 = vector.broadcast %cst_137 : f32 to vector<8x128xf32>
    %268 = arith.cmpf ogt, %257, %267 : vector<8x128xf32>
    %cst_138 = arith.constant 5.000000e-01 : f32
    %cst_139 = arith.constant 0.000000e+00 : f32
    %269 = vector.broadcast %cst_138 : f32 to vector<8x128xf32>
    %270 = vector.broadcast %cst_139 : f32 to vector<8x128xf32>
    %271 = arith.select %268, %269, %270 : vector<8x128xi1>, vector<8x128xf32>
    %272 = arith.subf %266, %271 : vector<8x128xf32>
    %cst_140 = arith.constant 5.000000e-01 : f32
    %273 = vector.broadcast %cst_140 : f32 to vector<8x128xf32>
    %274 = arith.cmpf ogt, %272, %273 : vector<8x128xf32>
    %cst_141 = arith.constant 1.000000e+00 : f32
    %cst_142 = arith.constant 0.000000e+00 : f32
    %275 = vector.broadcast %cst_141 : f32 to vector<8x128xf32>
    %276 = vector.broadcast %cst_142 : f32 to vector<8x128xf32>
    %277 = arith.select %274, %275, %276 : vector<8x128xi1>, vector<8x128xf32>
    %278 = vector.extract_strided_slice %246 {offsets = [16, 0], sizes = [8, 128], strides = [1, 1]} : vector<40x128xf32> to vector<8x128xf32>
    %cst_143 = arith.constant 0.949999988 : f32
    %279 = vector.broadcast %cst_143 : f32 to vector<8x128xf32>
    %280 = arith.mulf %279, %272 : vector<8x128xf32>
    %281 = arith.addf %280, %278 : vector<8x128xf32>
    %cst_144 = arith.constant 5.000000e-01 : f32
    %282 = vector.broadcast %cst_144 : f32 to vector<8x128xf32>
    %283 = arith.cmpf ogt, %272, %282 : vector<8x128xf32>
    %cst_145 = arith.constant 5.000000e-01 : f32
    %cst_146 = arith.constant 0.000000e+00 : f32
    %284 = vector.broadcast %cst_145 : f32 to vector<8x128xf32>
    %285 = vector.broadcast %cst_146 : f32 to vector<8x128xf32>
    %286 = arith.select %283, %284, %285 : vector<8x128xi1>, vector<8x128xf32>
    %287 = arith.subf %281, %286 : vector<8x128xf32>
    %cst_147 = arith.constant 5.000000e-01 : f32
    %288 = vector.broadcast %cst_147 : f32 to vector<8x128xf32>
    %289 = arith.cmpf ogt, %287, %288 : vector<8x128xf32>
    %cst_148 = arith.constant 1.000000e+00 : f32
    %cst_149 = arith.constant 0.000000e+00 : f32
    %290 = vector.broadcast %cst_148 : f32 to vector<8x128xf32>
    %291 = vector.broadcast %cst_149 : f32 to vector<8x128xf32>
    %292 = arith.select %289, %290, %291 : vector<8x128xi1>, vector<8x128xf32>
    %293 = vector.extract_strided_slice %246 {offsets = [24, 0], sizes = [8, 128], strides = [1, 1]} : vector<40x128xf32> to vector<8x128xf32>
    %cst_150 = arith.constant 0.949999988 : f32
    %294 = vector.broadcast %cst_150 : f32 to vector<8x128xf32>
    %295 = arith.mulf %294, %287 : vector<8x128xf32>
    %296 = arith.addf %295, %293 : vector<8x128xf32>
    %cst_151 = arith.constant 5.000000e-01 : f32
    %297 = vector.broadcast %cst_151 : f32 to vector<8x128xf32>
    %298 = arith.cmpf ogt, %287, %297 : vector<8x128xf32>
    %cst_152 = arith.constant 5.000000e-01 : f32
    %cst_153 = arith.constant 0.000000e+00 : f32
    %299 = vector.broadcast %cst_152 : f32 to vector<8x128xf32>
    %300 = vector.broadcast %cst_153 : f32 to vector<8x128xf32>
    %301 = arith.select %298, %299, %300 : vector<8x128xi1>, vector<8x128xf32>
    %302 = arith.subf %296, %301 : vector<8x128xf32>
    %cst_154 = arith.constant 5.000000e-01 : f32
    %303 = vector.broadcast %cst_154 : f32 to vector<8x128xf32>
    %304 = arith.cmpf ogt, %302, %303 : vector<8x128xf32>
    %cst_155 = arith.constant 1.000000e+00 : f32
    %cst_156 = arith.constant 0.000000e+00 : f32
    %305 = vector.broadcast %cst_155 : f32 to vector<8x128xf32>
    %306 = vector.broadcast %cst_156 : f32 to vector<8x128xf32>
    %307 = arith.select %304, %305, %306 : vector<8x128xi1>, vector<8x128xf32>
    %308 = vector.extract_strided_slice %246 {offsets = [32, 0], sizes = [8, 128], strides = [1, 1]} : vector<40x128xf32> to vector<8x128xf32>
    %cst_157 = arith.constant 0.949999988 : f32
    %309 = vector.broadcast %cst_157 : f32 to vector<8x128xf32>
    %310 = arith.mulf %309, %302 : vector<8x128xf32>
    %311 = arith.addf %310, %308 : vector<8x128xf32>
    %cst_158 = arith.constant 5.000000e-01 : f32
    %312 = vector.broadcast %cst_158 : f32 to vector<8x128xf32>
    %313 = arith.cmpf ogt, %302, %312 : vector<8x128xf32>
    %cst_159 = arith.constant 5.000000e-01 : f32
    %cst_160 = arith.constant 0.000000e+00 : f32
    %314 = vector.broadcast %cst_159 : f32 to vector<8x128xf32>
    %315 = vector.broadcast %cst_160 : f32 to vector<8x128xf32>
    %316 = arith.select %313, %314, %315 : vector<8x128xi1>, vector<8x128xf32>
    %317 = arith.subf %311, %316 : vector<8x128xf32>
    %cst_161 = arith.constant 5.000000e-01 : f32
    %318 = vector.broadcast %cst_161 : f32 to vector<8x128xf32>
    %319 = arith.cmpf ogt, %317, %318 : vector<8x128xf32>
    %cst_162 = arith.constant 1.000000e+00 : f32
    %cst_163 = arith.constant 0.000000e+00 : f32
    %320 = vector.broadcast %cst_162 : f32 to vector<8x128xf32>
    %321 = vector.broadcast %cst_163 : f32 to vector<8x128xf32>
    %322 = arith.select %319, %320, %321 : vector<8x128xi1>, vector<8x128xf32>
    %323 = tpu.concatenate %262, %277, %292, %307, %322 in 0 : vector<8x128xf32>, vector<8x128xf32>, vector<8x128xf32>, vector<8x128xf32>, vector<8x128xf32> -> vector<40x128xf32>
    %c0_164 = arith.constant 0 : index
    %c0_165 = arith.constant 0 : index
    %324 = vector.load %arg10[%c0_164, %c0_165] : memref<128x128xf32, #tpu.memory_space<vmem>>, vector<128x128xf32>
    %cst_166 = arith.constant dense<0.000000e+00> : vector<40x128xf32>
    %325 = tpu.matmul %323, %324, %cst_166 {dimension_numbers = #tpu.dot_dimension_numbers<[1], [0], [0], [1], [0, 0, 1, 1], [], []>} : vector<40x128xf32>, vector<128x128xf32>, vector<40x128xf32> -> vector<40x128xf32>
    %c0_167 = arith.constant 0 : index
    %c0_168 = arith.constant 0 : index
    %326 = vector.load %arg11[%c0_167, %c0_168] : memref<1x128xf32, #tpu.memory_space<vmem>>, vector<1x128xf32>
    %327 = vector.broadcast %326 : vector<1x128xf32> to vector<40x128xf32>
    %328 = arith.addf %325, %327 : vector<40x128xf32>
    %cst_169 = arith.constant 0.000000e+00 : f32
    %329 = vector.broadcast %cst_169 : f32 to vector<8x128xf32>
    %330 = vector.extract_strided_slice %328 {offsets = [0, 0], sizes = [8, 128], strides = [1, 1]} : vector<40x128xf32> to vector<8x128xf32>
    %cst_170 = arith.constant 0.949999988 : f32
    %331 = vector.broadcast %cst_170 : f32 to vector<8x128xf32>
    %332 = arith.mulf %331, %329 : vector<8x128xf32>
    %333 = arith.addf %332, %330 : vector<8x128xf32>
    %cst_171 = arith.constant 5.000000e-01 : f32
    %334 = vector.broadcast %cst_171 : f32 to vector<8x128xf32>
    %335 = arith.cmpf ogt, %329, %334 : vector<8x128xf32>
    %cst_172 = arith.constant 5.000000e-01 : f32
    %cst_173 = arith.constant 0.000000e+00 : f32
    %336 = vector.broadcast %cst_172 : f32 to vector<8x128xf32>
    %337 = vector.broadcast %cst_173 : f32 to vector<8x128xf32>
    %338 = arith.select %335, %336, %337 : vector<8x128xi1>, vector<8x128xf32>
    %339 = arith.subf %333, %338 : vector<8x128xf32>
    %cst_174 = arith.constant 5.000000e-01 : f32
    %340 = vector.broadcast %cst_174 : f32 to vector<8x128xf32>
    %341 = arith.cmpf ogt, %339, %340 : vector<8x128xf32>
    %cst_175 = arith.constant 1.000000e+00 : f32
    %cst_176 = arith.constant 0.000000e+00 : f32
    %342 = vector.broadcast %cst_175 : f32 to vector<8x128xf32>
    %343 = vector.broadcast %cst_176 : f32 to vector<8x128xf32>
    %344 = arith.select %341, %342, %343 : vector<8x128xi1>, vector<8x128xf32>
    %345 = vector.extract_strided_slice %328 {offsets = [8, 0], sizes = [8, 128], strides = [1, 1]} : vector<40x128xf32> to vector<8x128xf32>
    %cst_177 = arith.constant 0.949999988 : f32
    %346 = vector.broadcast %cst_177 : f32 to vector<8x128xf32>
    %347 = arith.mulf %346, %339 : vector<8x128xf32>
    %348 = arith.addf %347, %345 : vector<8x128xf32>
    %cst_178 = arith.constant 5.000000e-01 : f32
    %349 = vector.broadcast %cst_178 : f32 to vector<8x128xf32>
    %350 = arith.cmpf ogt, %339, %349 : vector<8x128xf32>
    %cst_179 = arith.constant 5.000000e-01 : f32
    %cst_180 = arith.constant 0.000000e+00 : f32
    %351 = vector.broadcast %cst_179 : f32 to vector<8x128xf32>
    %352 = vector.broadcast %cst_180 : f32 to vector<8x128xf32>
    %353 = arith.select %350, %351, %352 : vector<8x128xi1>, vector<8x128xf32>
    %354 = arith.subf %348, %353 : vector<8x128xf32>
    %cst_181 = arith.constant 5.000000e-01 : f32
    %355 = vector.broadcast %cst_181 : f32 to vector<8x128xf32>
    %356 = arith.cmpf ogt, %354, %355 : vector<8x128xf32>
    %cst_182 = arith.constant 1.000000e+00 : f32
    %cst_183 = arith.constant 0.000000e+00 : f32
    %357 = vector.broadcast %cst_182 : f32 to vector<8x128xf32>
    %358 = vector.broadcast %cst_183 : f32 to vector<8x128xf32>
    %359 = arith.select %356, %357, %358 : vector<8x128xi1>, vector<8x128xf32>
    %360 = vector.extract_strided_slice %328 {offsets = [16, 0], sizes = [8, 128], strides = [1, 1]} : vector<40x128xf32> to vector<8x128xf32>
    %cst_184 = arith.constant 0.949999988 : f32
    %361 = vector.broadcast %cst_184 : f32 to vector<8x128xf32>
    %362 = arith.mulf %361, %354 : vector<8x128xf32>
    %363 = arith.addf %362, %360 : vector<8x128xf32>
    %cst_185 = arith.constant 5.000000e-01 : f32
    %364 = vector.broadcast %cst_185 : f32 to vector<8x128xf32>
    %365 = arith.cmpf ogt, %354, %364 : vector<8x128xf32>
    %cst_186 = arith.constant 5.000000e-01 : f32
    %cst_187 = arith.constant 0.000000e+00 : f32
    %366 = vector.broadcast %cst_186 : f32 to vector<8x128xf32>
    %367 = vector.broadcast %cst_187 : f32 to vector<8x128xf32>
    %368 = arith.select %365, %366, %367 : vector<8x128xi1>, vector<8x128xf32>
    %369 = arith.subf %363, %368 : vector<8x128xf32>
    %cst_188 = arith.constant 5.000000e-01 : f32
    %370 = vector.broadcast %cst_188 : f32 to vector<8x128xf32>
    %371 = arith.cmpf ogt, %369, %370 : vector<8x128xf32>
    %cst_189 = arith.constant 1.000000e+00 : f32
    %cst_190 = arith.constant 0.000000e+00 : f32
    %372 = vector.broadcast %cst_189 : f32 to vector<8x128xf32>
    %373 = vector.broadcast %cst_190 : f32 to vector<8x128xf32>
    %374 = arith.select %371, %372, %373 : vector<8x128xi1>, vector<8x128xf32>
    %375 = vector.extract_strided_slice %328 {offsets = [24, 0], sizes = [8, 128], strides = [1, 1]} : vector<40x128xf32> to vector<8x128xf32>
    %cst_191 = arith.constant 0.949999988 : f32
    %376 = vector.broadcast %cst_191 : f32 to vector<8x128xf32>
    %377 = arith.mulf %376, %369 : vector<8x128xf32>
    %378 = arith.addf %377, %375 : vector<8x128xf32>
    %cst_192 = arith.constant 5.000000e-01 : f32
    %379 = vector.broadcast %cst_192 : f32 to vector<8x128xf32>
    %380 = arith.cmpf ogt, %369, %379 : vector<8x128xf32>
    %cst_193 = arith.constant 5.000000e-01 : f32
    %cst_194 = arith.constant 0.000000e+00 : f32
    %381 = vector.broadcast %cst_193 : f32 to vector<8x128xf32>
    %382 = vector.broadcast %cst_194 : f32 to vector<8x128xf32>
    %383 = arith.select %380, %381, %382 : vector<8x128xi1>, vector<8x128xf32>
    %384 = arith.subf %378, %383 : vector<8x128xf32>
    %cst_195 = arith.constant 5.000000e-01 : f32
    %385 = vector.broadcast %cst_195 : f32 to vector<8x128xf32>
    %386 = arith.cmpf ogt, %384, %385 : vector<8x128xf32>
    %cst_196 = arith.constant 1.000000e+00 : f32
    %cst_197 = arith.constant 0.000000e+00 : f32
    %387 = vector.broadcast %cst_196 : f32 to vector<8x128xf32>
    %388 = vector.broadcast %cst_197 : f32 to vector<8x128xf32>
    %389 = arith.select %386, %387, %388 : vector<8x128xi1>, vector<8x128xf32>
    %390 = vector.extract_strided_slice %328 {offsets = [32, 0], sizes = [8, 128], strides = [1, 1]} : vector<40x128xf32> to vector<8x128xf32>
    %cst_198 = arith.constant 0.949999988 : f32
    %391 = vector.broadcast %cst_198 : f32 to vector<8x128xf32>
    %392 = arith.mulf %391, %384 : vector<8x128xf32>
    %393 = arith.addf %392, %390 : vector<8x128xf32>
    %cst_199 = arith.constant 5.000000e-01 : f32
    %394 = vector.broadcast %cst_199 : f32 to vector<8x128xf32>
    %395 = arith.cmpf ogt, %384, %394 : vector<8x128xf32>
    %cst_200 = arith.constant 5.000000e-01 : f32
    %cst_201 = arith.constant 0.000000e+00 : f32
    %396 = vector.broadcast %cst_200 : f32 to vector<8x128xf32>
    %397 = vector.broadcast %cst_201 : f32 to vector<8x128xf32>
    %398 = arith.select %395, %396, %397 : vector<8x128xi1>, vector<8x128xf32>
    %399 = arith.subf %393, %398 : vector<8x128xf32>
    %cst_202 = arith.constant 5.000000e-01 : f32
    %400 = vector.broadcast %cst_202 : f32 to vector<8x128xf32>
    %401 = arith.cmpf ogt, %399, %400 : vector<8x128xf32>
    %cst_203 = arith.constant 1.000000e+00 : f32
    %cst_204 = arith.constant 0.000000e+00 : f32
    %402 = vector.broadcast %cst_203 : f32 to vector<8x128xf32>
    %403 = vector.broadcast %cst_204 : f32 to vector<8x128xf32>
    %404 = arith.select %401, %402, %403 : vector<8x128xi1>, vector<8x128xf32>
    %c0_205 = arith.constant 0 : index
    %c0_206 = arith.constant 0 : index
    %c0_207 = arith.constant 0 : index
    %405 = vector.load %arg12[%c0_205, %c0_206, %c0_207] : memref<5x8x256xf32, #tpu.memory_space<vmem>>, vector<1x8x128xf32>
    %406 = vector.shape_cast %405 : vector<1x8x128xf32> to vector<8x128xf32>
    %407 = vector.shape_cast %344 : vector<8x128xf32> to vector<1x8x128xf32>
    tpu.vector_store %arg12[%c0_205, %c0_206, %c0_207], %407 {strides = array<i32>} : memref<5x8x256xf32, #tpu.memory_space<vmem>>, vector<1x8x128xf32>,
    %c0_208 = arith.constant 0 : index
    %c0_209 = arith.constant 0 : index
    %c128 = arith.constant 128 : index
    %408 = vector.load %arg12[%c0_208, %c0_209, %c128] : memref<5x8x256xf32, #tpu.memory_space<vmem>>, vector<1x8x128xf32>
    %409 = vector.shape_cast %408 : vector<1x8x128xf32> to vector<8x128xf32>
    %410 = vector.shape_cast %339 : vector<8x128xf32> to vector<1x8x128xf32>
    tpu.vector_store %arg12[%c0_208, %c0_209, %c128], %410 {strides = array<i32>} : memref<5x8x256xf32, #tpu.memory_space<vmem>>, vector<1x8x128xf32>,
    %c1 = arith.constant 1 : index
    %c0_210 = arith.constant 0 : index
    %c0_211 = arith.constant 0 : index
    %411 = vector.load %arg12[%c1, %c0_210, %c0_211] : memref<5x8x256xf32, #tpu.memory_space<vmem>>, vector<1x8x128xf32>
    %412 = vector.shape_cast %411 : vector<1x8x128xf32> to vector<8x128xf32>
    %413 = vector.shape_cast %359 : vector<8x128xf32> to vector<1x8x128xf32>
    tpu.vector_store %arg12[%c1, %c0_210, %c0_211], %413 {strides = array<i32>} : memref<5x8x256xf32, #tpu.memory_space<vmem>>, vector<1x8x128xf32>,
    %c1_212 = arith.constant 1 : index
    %c0_213 = arith.constant 0 : index
    %c128_214 = arith.constant 128 : index
    %414 = vector.load %arg12[%c1_212, %c0_213, %c128_214] : memref<5x8x256xf32, #tpu.memory_space<vmem>>, vector<1x8x128xf32>
    %415 = vector.shape_cast %414 : vector<1x8x128xf32> to vector<8x128xf32>
    %416 = vector.shape_cast %354 : vector<8x128xf32> to vector<1x8x128xf32>
    tpu.vector_store %arg12[%c1_212, %c0_213, %c128_214], %416 {strides = array<i32>} : memref<5x8x256xf32, #tpu.memory_space<vmem>>, vector<1x8x128xf32>,
    %c2 = arith.constant 2 : index
    %c0_215 = arith.constant 0 : index
    %c0_216 = arith.constant 0 : index
    %417 = vector.load %arg12[%c2, %c0_215, %c0_216] : memref<5x8x256xf32, #tpu.memory_space<vmem>>, vector<1x8x128xf32>
    %418 = vector.shape_cast %417 : vector<1x8x128xf32> to vector<8x128xf32>
    %419 = vector.shape_cast %374 : vector<8x128xf32> to vector<1x8x128xf32>
    tpu.vector_store %arg12[%c2, %c0_215, %c0_216], %419 {strides = array<i32>} : memref<5x8x256xf32, #tpu.memory_space<vmem>>, vector<1x8x128xf32>,
    %c2_217 = arith.constant 2 : index
    %c0_218 = arith.constant 0 : index
    %c128_219 = arith.constant 128 : index
    %420 = vector.load %arg12[%c2_217, %c0_218, %c128_219] : memref<5x8x256xf32, #tpu.memory_space<vmem>>, vector<1x8x128xf32>
    %421 = vector.shape_cast %420 : vector<1x8x128xf32> to vector<8x128xf32>
    %422 = vector.shape_cast %369 : vector<8x128xf32> to vector<1x8x128xf32>
    tpu.vector_store %arg12[%c2_217, %c0_218, %c128_219], %422 {strides = array<i32>} : memref<5x8x256xf32, #tpu.memory_space<vmem>>, vector<1x8x128xf32>,
    %c3 = arith.constant 3 : index
    %c0_220 = arith.constant 0 : index
    %c0_221 = arith.constant 0 : index
    %423 = vector.load %arg12[%c3, %c0_220, %c0_221] : memref<5x8x256xf32, #tpu.memory_space<vmem>>, vector<1x8x128xf32>
    %424 = vector.shape_cast %423 : vector<1x8x128xf32> to vector<8x128xf32>
    %425 = vector.shape_cast %389 : vector<8x128xf32> to vector<1x8x128xf32>
    tpu.vector_store %arg12[%c3, %c0_220, %c0_221], %425 {strides = array<i32>} : memref<5x8x256xf32, #tpu.memory_space<vmem>>, vector<1x8x128xf32>,
    %c3_222 = arith.constant 3 : index
    %c0_223 = arith.constant 0 : index
    %c128_224 = arith.constant 128 : index
    %426 = vector.load %arg12[%c3_222, %c0_223, %c128_224] : memref<5x8x256xf32, #tpu.memory_space<vmem>>, vector<1x8x128xf32>
    %427 = vector.shape_cast %426 : vector<1x8x128xf32> to vector<8x128xf32>
    %428 = vector.shape_cast %384 : vector<8x128xf32> to vector<1x8x128xf32>
    tpu.vector_store %arg12[%c3_222, %c0_223, %c128_224], %428 {strides = array<i32>} : memref<5x8x256xf32, #tpu.memory_space<vmem>>, vector<1x8x128xf32>,
    %c4 = arith.constant 4 : index
    %c0_225 = arith.constant 0 : index
    %c0_226 = arith.constant 0 : index
    %429 = vector.load %arg12[%c4, %c0_225, %c0_226] : memref<5x8x256xf32, #tpu.memory_space<vmem>>, vector<1x8x128xf32>
    %430 = vector.shape_cast %429 : vector<1x8x128xf32> to vector<8x128xf32>
    %431 = vector.shape_cast %404 : vector<8x128xf32> to vector<1x8x128xf32>
    tpu.vector_store %arg12[%c4, %c0_225, %c0_226], %431 {strides = array<i32>} : memref<5x8x256xf32, #tpu.memory_space<vmem>>, vector<1x8x128xf32>,
    %c4_227 = arith.constant 4 : index
    %c0_228 = arith.constant 0 : index
    %c128_229 = arith.constant 128 : index
    %432 = vector.load %arg12[%c4_227, %c0_228, %c128_229] : memref<5x8x256xf32, #tpu.memory_space<vmem>>, vector<1x8x128xf32>
    %433 = vector.shape_cast %432 : vector<1x8x128xf32> to vector<8x128xf32>
    %434 = vector.shape_cast %399 : vector<8x128xf32> to vector<1x8x128xf32>
    tpu.vector_store %arg12[%c4_227, %c0_228, %c128_229], %434 {strides = array<i32>} : memref<5x8x256xf32, #tpu.memory_space<vmem>>, vector<1x8x128xf32>,
    return
  }
  func.func @transform_0(%arg0: i32) -> (i32, i32) {
    %c0_i32 = arith.constant 0 : i32
    %c0_i32_0 = arith.constant 0 : i32
    return %arg0, %c0_i32 : i32, i32
  }
  func.func @transform_1(%arg0: i32) -> (i32, i32) {
    %c0_i32 = arith.constant 0 : i32
    %c0_i32_0 = arith.constant 0 : i32
    %c0_i32_1 = arith.constant 0 : i32
    return %c0_i32, %c0_i32_0 : i32, i32
  }
  func.func @transform_2(%arg0: i32) -> (i32, i32) {
    %c0_i32 = arith.constant 0 : i32
    %c0_i32_0 = arith.constant 0 : i32
    %c0_i32_1 = arith.constant 0 : i32
    return %c0_i32, %c0_i32_0 : i32, i32
  }
  func.func @transform_3(%arg0: i32) -> (i32, i32) {
    %c0_i32 = arith.constant 0 : i32
    %c0_i32_0 = arith.constant 0 : i32
    %c0_i32_1 = arith.constant 0 : i32
    return %c0_i32, %c0_i32_0 : i32, i32
  }
  func.func @transform_4(%arg0: i32) -> (i32, i32) {
    %c0_i32 = arith.constant 0 : i32
    %c0_i32_0 = arith.constant 0 : i32
    %c0_i32_1 = arith.constant 0 : i32
    return %c0_i32, %c0_i32_0 : i32, i32
  }
  func.func @transform_5(%arg0: i32) -> (i32, i32) {
    %c0_i32 = arith.constant 0 : i32
    %c0_i32_0 = arith.constant 0 : i32
    %c0_i32_1 = arith.constant 0 : i32
    return %c0_i32, %c0_i32_0 : i32, i32
  }
  func.func @transform_6(%arg0: i32) -> (i32, i32) {
    %c0_i32 = arith.constant 0 : i32
    %c0_i32_0 = arith.constant 0 : i32
    %c0_i32_1 = arith.constant 0 : i32
    return %c0_i32, %c0_i32_0 : i32, i32
  }
  func.func @transform_7(%arg0: i32) -> (i32, i32) {
    %c0_i32 = arith.constant 0 : i32
    %c0_i32_0 = arith.constant 0 : i32
    %c0_i32_1 = arith.constant 0 : i32
    return %c0_i32, %c0_i32_0 : i32, i32
  }
  func.func @transform_8(%arg0: i32) -> (i32, i32) {
    %c0_i32 = arith.constant 0 : i32
    %c0_i32_0 = arith.constant 0 : i32
    %c0_i32_1 = arith.constant 0 : i32
    return %c0_i32, %c0_i32_0 : i32, i32
  }
  func.func @transform_9(%arg0: i32) -> (i32, i32) {
    %c0_i32 = arith.constant 0 : i32
    %c0_i32_0 = arith.constant 0 : i32
    %c0_i32_1 = arith.constant 0 : i32
    return %c0_i32, %c0_i32_0 : i32, i32
  }
  func.func @transform_10(%arg0: i32) -> (i32, i32) {
    %c0_i32 = arith.constant 0 : i32
    %c0_i32_0 = arith.constant 0 : i32
    %c0_i32_1 = arith.constant 0 : i32
    return %c0_i32, %c0_i32_0 : i32, i32
  }
  func.func @transform_11(%arg0: i32) -> (i32, i32, i32) {
    %c0_i32 = arith.constant 0 : i32
    %c0_i32_0 = arith.constant 0 : i32
    %c0_i32_1 = arith.constant 0 : i32
    return %c0_i32, %arg0, %c0_i32_0 : i32, i32, i32
  }
}

</mosaic_0001>

<llo_original>
// kernel: deep_snn_forward.1
$region0: #{deep_snn_forward.1}
  #allocation0 [shape = 'u32[]', space=smem, size = 0x4, offset = 0x4, fixed_abs, tag = 'smem constant byte address 0x4 - core index']
  #allocation1 [shape = 'u32[144,128]{1,0:T(1,128)}', space=vmem, size = 0x12000, scoped, tag = 'internal scratch']
  %s0 = inlined_call_operand.vmem [shape: f32[8,32], index: 0, kind: input, shape index: {}]
  %s1 = inlined_call_operand.vmem [shape: f32[32,128], index: 1, kind: input, shape index: {}]
  %s2 = inlined_call_operand.vmem [shape: f32[1,128], index: 2, kind: input, shape index: {}]
  %s3 = inlined_call_operand.vmem [shape: f32[128,128], index: 3, kind: input, shape index: {}]
  %s4 = inlined_call_operand.vmem [shape: f32[1,128], index: 4, kind: input, shape index: {}]
  %s5 = inlined_call_operand.vmem [shape: f32[128,128], index: 5, kind: input, shape index: {}]
  %s6 = inlined_call_operand.vmem [shape: f32[1,128], index: 6, kind: input, shape index: {}]
  %s7 = inlined_call_operand.vmem [shape: f32[128,128], index: 7, kind: input, shape index: {}]
  %s8 = inlined_call_operand.vmem [shape: f32[1,128], index: 8, kind: input, shape index: {}]
  %s9 = inlined_call_operand.vmem [shape: f32[128,128], index: 9, kind: input, shape index: {}]
  %s10 = inlined_call_operand.vmem [shape: f32[1,128], index: 10, kind: input, shape index: {}]
  %s11 = inlined_call_operand.vmem [shape: f32[5,8,256], index: 11, kind: output, shape index: {}]
  %s12 = sld [smem:[#allocation0]]
  $region54: #{deep_snn_forward.1} parent=0
    _
  %s14 = ssub.s32 1, %s12
  %s15 = scalar_select 0, %s14, %s12
  // Predicated region
  $region2: #{deep_snn_forward.1} parent=0 // pred_check
    _
  $region3: #{deep_snn_forward.1} parent=0 // pred_check_branch
    %17 = sbr.rel (0) target = $region5
  $region4: #{deep_snn_forward.1} parent=0 // pred_region
    _
  $region5: #{deep_snn_forward.1} parent=0 // pred_fallthru
    _
  // Predicated region
  $region6: #{deep_snn_forward.1} parent=0 // pred_check
    _
  $region7: #{deep_snn_forward.1} parent=0 // pred_check_branch
    %19 = sbr.rel (0) target = $region9
  $region8: #{deep_snn_forward.1} parent=0 // pred_region
    _
  $region9: #{deep_snn_forward.1} parent=0 // pred_fallthru
    _
  // Predicated region
  $region10: #{deep_snn_forward.1} parent=0 // pred_check
    _
  $region11: #{deep_snn_forward.1} parent=0 // pred_check_branch
    %21 = sbr.rel (0) target = $region13
  $region12: #{deep_snn_forward.1} parent=0 // pred_region
    _
  $region13: #{deep_snn_forward.1} parent=0 // pred_fallthru
    _
  // Predicated region
  $region14: #{deep_snn_forward.1} parent=0 // pred_check
    _
  $region15: #{deep_snn_forward.1} parent=0 // pred_check_branch
    %23 = sbr.rel (0) target = $region17
  $region16: #{deep_snn_forward.1} parent=0 // pred_region
    _
  $region17: #{deep_snn_forward.1} parent=0 // pred_fallthru
    _
  // Predicated region
  $region18: #{deep_snn_forward.1} parent=0 // pred_check
    _
  $region19: #{deep_snn_forward.1} parent=0 // pred_check_branch
    %25 = sbr.rel (0) target = $region21
  $region20: #{deep_snn_forward.1} parent=0 // pred_region
    _
  $region21: #{deep_snn_forward.1} parent=0 // pred_fallthru
    _
  // Predicated region
  $region22: #{deep_snn_forward.1} parent=0 // pred_check
    _
  $region23: #{deep_snn_forward.1} parent=0 // pred_check_branch
    %27 = sbr.rel (0) target = $region25
  $region24: #{deep_snn_forward.1} parent=0 // pred_region
    _
  $region25: #{deep_snn_forward.1} parent=0 // pred_fallthru
    _
  // Predicated region
  $region26: #{deep_snn_forward.1} parent=0 // pred_check
    _
  $region27: #{deep_snn_forward.1} parent=0 // pred_check_branch
    %29 = sbr.rel (0) target = $region29
  $region28: #{deep_snn_forward.1} parent=0 // pred_region
    _
  $region29: #{deep_snn_forward.1} parent=0 // pred_fallthru
    _
  // Predicated region
  $region30: #{deep_snn_forward.1} parent=0 // pred_check
    _
  $region31: #{deep_snn_forward.1} parent=0 // pred_check_branch
    %31 = sbr.rel (0) target = $region33
  $region32: #{deep_snn_forward.1} parent=0 // pred_region
    _
  $region33: #{deep_snn_forward.1} parent=0 // pred_fallthru
    _
  // Predicated region
  $region34: #{deep_snn_forward.1} parent=0 // pred_check
    _
  $region35: #{deep_snn_forward.1} parent=0 // pred_check_branch
    %33 = sbr.rel (0) target = $region37
  $region36: #{deep_snn_forward.1} parent=0 // pred_region
    _
  $region37: #{deep_snn_forward.1} parent=0 // pred_fallthru
    _
  // Predicated region
  $region38: #{deep_snn_forward.1} parent=0 // pred_check
    _
  $region39: #{deep_snn_forward.1} parent=0 // pred_check_branch
    %35 = sbr.rel (0) target = $region41
  $region40: #{deep_snn_forward.1} parent=0 // pred_region
    _
  $region41: #{deep_snn_forward.1} parent=0 // pred_fallthru
    _
  // Predicated region
  $region42: #{deep_snn_forward.1} parent=0 // pred_check
    _
  $region43: #{deep_snn_forward.1} parent=0 // pred_check_branch
    %37 = sbr.rel (0) target = $region45
  $region44: #{deep_snn_forward.1} parent=0 // pred_region
    _
  $region45: #{deep_snn_forward.1} parent=0 // pred_fallthru
    _
  %v38 = vld [vmem:[%s0] sm:$0xff]
  %v39 = vld [vmem:[%s1] sm:$0xff]
  %v40 = vld [vmem:[%s1 + $0x8] sm:$0xff]
  %v41 = vld [vmem:[%s1 + $0x10] sm:$0xff]
  %v42 = vld [vmem:[%s1 + $0x18] sm:$0xff]
  %v43 = vld [vmem:[%s2] sm:$0x1]
  %v45 = vlaneseq
  %v46 = vshrl.u32 %v45, 7
  %v47 = vsub.s32 0, %v46
  %v48 = vrot.slane %v43, %v47
  %vm50 = vcmask 261120
  %v52 = vsel %vm50, %v38, 0
  %54 = vmatprep.subr.mxu0 0.0
  %55 = vmatpush1.msra.mxu0 %v39
  %56 = vmatprep.subr.mxu0 0.0
  %57 = vmatpush1.msra.mxu0 %v40
  %58 = vmatprep.subr.mxu0 0.0
  %59 = vmatpush1.msra.mxu0 %v41
  %60 = vmatprep.subr.mxu0 0.0
  %61 = vmatpush1.msra.mxu0 %v42
  %62 = vmatprep.subr.mxu0 0.0
  %63 = vmatpush1.msra.mxu0 0.0
  %64 = vmatprep.subr.mxu0 0.0
  %65 = vmatpush1.msra.mxu0 0.0
  %66 = vmatprep.subr.mxu0 0.0
  %67 = vmatpush1.msra.mxu0 0.0
  %68 = vmatprep.subr.mxu0 0.0
  %69 = vmatpush1.msra.mxu0 0.0
  %70 = vmatprep.subr.mxu0 0.0
  %71 = vmatpush1.msra.mxu0 0.0
  %72 = vmatprep.subr.mxu0 0.0
  %73 = vmatpush1.msra.mxu0 0.0
  %74 = vmatprep.subr.mxu0 0.0
  %75 = vmatpush1.msra.mxu0 0.0
  %76 = vmatprep.subr.mxu0 0.0
  %77 = vmatpush1.msra.mxu0 0.0
  %78 = vmatprep.subr.mxu0 0.0
  %79 = vmatpush1.msra.mxu0 0.0
  %80 = vmatprep.subr.mxu0 0.0
  %81 = vmatpush1.msra.mxu0 0.0
  %82 = vmatprep.subr.mxu0 0.0
  %83 = vmatpush1.msra.mxu0 0.0
  %84 = vmatprep.subr.mxu0 0.0
  %85 = vmatpush1.msra.mxu0 0.0
  %86 = vmatprep.subr.mxu0 0.0
  %87 = vmatpush1.msra.mxu0 0.0
  %88 = vmatprep.subr.mxu0 0.0
  %89 = vmatpush1.msra.mxu0 0.0
  %90 = vmatprep.subr.mxu0 0.0
  %91 = vmatpush1.msra.mxu0 0.0
  %92 = vmatprep.subr.mxu0 0.0
  %93 = vmatpush1.msra.mxu0 0.0
  %94 = vmatprep.subr.mxu0 0.0
  %95 = vmatpush1.msra.mxu0 0.0
  %96 = vmatprep.subr.mxu0 0.0
  %97 = vmatpush1.msra.mxu0 0.0
  %98 = vmatprep.subr.mxu0 0.0
  %99 = vmatpush1.msra.mxu0 0.0
  %100 = vmatprep.subr.mxu0 0.0
  %101 = vmatpush1.msra.mxu0 0.0
  %102 = vmatprep.subr.mxu0 0.0
  %103 = vmatpush1.msra.mxu0 0.0
  %104 = vmatprep.subr.mxu0 0.0
  %105 = vmatpush1.msra.mxu0 0.0
  %106 = vmatprep.subr.mxu0 0.0
  %107 = vmatpush1.msra.mxu0 0.0
  %108 = vmatprep.subr.mxu0 0.0
  %109 = vmatpush1.msra.mxu0 0.0
  %110 = vmatprep.subr.mxu0 0.0
  %111 = vmatpush1.msra.mxu0 0.0
  %112 = vmatprep.subr.mxu0 0.0
  %113 = vmatpush1.msra.mxu0 0.0
  %114 = vmatprep.subr.mxu0 0.0
  %115 = vmatpush1.msra.mxu0 0.0
  %116 = vmatprep.subr.mxu0 0.0
  %117 = vmatpush1.msra.mxu0 0.0
  %118 = vmatprep.mubr.f32.mxu0 0.0
  %119 = vmatmul.mubr.f32.gmra.mrb[0].mxu0 %v52
  %v120 = vpop.f32.mrb[0].mxu0
  %v121 = vadd.f32 %v48, %v120
  %v122 = vpop.f32.mrb[0].mxu0
  %123 = vdwg.mxu0
  %v124 = vadd.f32 %v121, 0.0
  %vm125 = vcmp.gt.f32.partialorder 0.0, 0.5
  %v126 = vsel %vm125, 0.5, 0.0
  %v127 = vsub.f32 %v124, %v126
  %vm128 = vcmp.gt.f32.partialorder %v127, 0.5
  %v129 = vsel %vm128, 1.0, 0.0
  %v130 = vmul.f32 %v127, 0.95
  %v131 = vadd.f32 %v130, %v121
  %v132 = vsel %vm128, 0.5, 0.0
  %v133 = vsub.f32 %v131, %v132
  %vm134 = vcmp.gt.f32.partialorder %v133, 0.5
  %v135 = vsel %vm134, 1.0, 0.0
  %v136 = vmul.f32 %v133, 0.95
  %v137 = vadd.f32 %v136, %v121
  %v138 = vsel %vm134, 0.5, 0.0
  %v139 = vsub.f32 %v137, %v138
  %vm140 = vcmp.gt.f32.partialorder %v139, 0.5
  %v141 = vsel %vm140, 1.0, 0.0
  %v142 = vmul.f32 %v139, 0.95
  %v143 = vadd.f32 %v142, %v121
  %v144 = vsel %vm140, 0.5, 0.0
  %v145 = vsub.f32 %v143, %v144
  %vm146 = vcmp.gt.f32.partialorder %v145, 0.5
  %v147 = vsel %vm146, 1.0, 0.0
  %v148 = vmul.f32 %v145, 0.95
  %v149 = vadd.f32 %v148, %v121
  %v150 = vsel %vm146, 0.5, 0.0
  %v151 = vsub.f32 %v149, %v150
  %vm152 = vcmp.gt.f32.partialorder %v151, 0.5
  %v153 = vsel %vm152, 1.0, 0.0
  %v154 = vld [vmem:[%s3] sm:$0xff]
  %v155 = vld [vmem:[%s3 + $0x8] sm:$0xff]
  %v156 = vld [vmem:[%s3 + $0x10] sm:$0xff]
  %v157 = vld [vmem:[%s3 + $0x18] sm:$0xff]
  %v158 = vld [vmem:[%s3 + $0x20] sm:$0xff]
  %v159 = vld [vmem:[%s3 + $0x28] sm:$0xff]
  %v160 = vld [vmem:[%s3 + $0x30] sm:$0xff]
  %v161 = vld [vmem:[%s3 + $0x38] sm:$0xff]
  %v162 = vld [vmem:[%s3 + $0x40] sm:$0xff]
  %v163 = vld [vmem:[%s3 + $0x48] sm:$0xff]
  %v164 = vld [vmem:[%s3 + $0x50] sm:$0xff]
  %v165 = vld [vmem:[%s3 + $0x58] sm:$0xff]
  %v166 = vld [vmem:[%s3 + $0x60] sm:$0xff]
  %v167 = vld [vmem:[%s3 + $0x68] sm:$0xff]
  %v168 = vld [vmem:[%s3 + $0x70] sm:$0xff]
  %v169 = vld [vmem:[%s3 + $0x78] sm:$0xff]
  %v170 = vld [vmem:[%s4] sm:$0x1]
  %v172 = vlaneseq
  %v173 = vshrl.u32 %v172, 7
  %v174 = vsub.s32 0, %v173
  %v175 = vrot.slane %v170, %v174
  %177 = vmatprep.subr.mxu0 0.0
  %178 = vmatpush1.msra.mxu0 %v154
  %179 = vmatprep.subr.mxu0 0.0
  %180 = vmatpush1.msra.mxu0 %v155
  %181 = vmatprep.subr.mxu0 0.0
  %182 = vmatpush1.msra.mxu0 %v156
  %183 = vmatprep.subr.mxu0 0.0
  %184 = vmatpush1.msra.mxu0 %v157
  %185 = vmatprep.subr.mxu0 0.0
  %186 = vmatpush1.msra.mxu0 %v158
  %187 = vmatprep.subr.mxu0 0.0
  %188 = vmatpush1.msra.mxu0 %v159
  %189 = vmatprep.subr.mxu0 0.0
  %190 = vmatpush1.msra.mxu0 %v160
  %191 = vmatprep.subr.mxu0 0.0
  %192 = vmatpush1.msra.mxu0 %v161
  %193 = vmatprep.subr.mxu0 0.0
  %194 = vmatpush1.msra.mxu0 %v162
  %195 = vmatprep.subr.mxu0 0.0
  %196 = vmatpush1.msra.mxu0 %v163
  %197 = vmatprep.subr.mxu0 0.0
  %198 = vmatpush1.msra.mxu0 %v164
  %199 = vmatprep.subr.mxu0 0.0
  %200 = vmatpush1.msra.mxu0 %v165
  %201 = vmatprep.subr.mxu0 0.0
  %202 = vmatpush1.msra.mxu0 %v166
  %203 = vmatprep.subr.mxu0 0.0
  %204 = vmatpush1.msra.mxu0 %v167
  %205 = vmatprep.subr.mxu0 0.0
  %206 = vmatpush1.msra.mxu0 %v168
  %207 = vmatprep.subr.mxu0 0.0
  %208 = vmatpush1.msra.mxu0 %v169
  %209 = vmatprep.subr.mxu0 0.0
  %210 = vmatpush1.msra.mxu0 0.0
  %211 = vmatprep.subr.mxu0 0.0
  %212 = vmatpush1.msra.mxu0 0.0
  %213 = vmatprep.subr.mxu0 0.0
  %214 = vmatpush1.msra.mxu0 0.0
  %215 = vmatprep.subr.mxu0 0.0
  %216 = vmatpush1.msra.mxu0 0.0
  %217 = vmatprep.subr.mxu0 0.0
  %218 = vmatpush1.msra.mxu0 0.0
  %219 = vmatprep.subr.mxu0 0.0
  %220 = vmatpush1.msra.mxu0 0.0
  %221 = vmatprep.subr.mxu0 0.0
  %222 = vmatpush1.msra.mxu0 0.0
  %223 = vmatprep.subr.mxu0 0.0
  %224 = vmatpush1.msra.mxu0 0.0
  %225 = vmatprep.subr.mxu0 0.0
  %226 = vmatpush1.msra.mxu0 0.0
  %227 = vmatprep.subr.mxu0 0.0
  %228 = vmatpush1.msra.mxu0 0.0
  %229 = vmatprep.subr.mxu0 0.0
  %230 = vmatpush1.msra.mxu0 0.0
  %231 = vmatprep.subr.mxu0 0.0
  %232 = vmatpush1.msra.mxu0 0.0
  %233 = vmatprep.subr.mxu0 0.0
  %234 = vmatpush1.msra.mxu0 0.0
  %235 = vmatprep.subr.mxu0 0.0
  %236 = vmatpush1.msra.mxu0 0.0
  %237 = vmatprep.subr.mxu0 0.0
  %238 = vmatpush1.msra.mxu0 0.0
  %239 = vmatprep.subr.mxu0 0.0
  %240 = vmatpush1.msra.mxu0 0.0
  %241 = vmatprep.mubr.f32.mxu0 0.0
  %242 = vmatmul.mubr.f32.gmra.mrb[0].mxu0 %v129
  %v243 = vpop.f32.mrb[0].mxu0
  %v244 = vadd.f32 %v175, %v243
  %v245 = vpop.f32.mrb[0].mxu0
  %246 = vmatprep.mubr.f32.mxu0 0.0
  %247 = vmatmul.mubr.f32.gmra.mrb[0].mxu0 %v135
  %v248 = vpop.f32.mrb[0].mxu0
  %v249 = vadd.f32 %v175, %v248
  %v250 = vpop.f32.mrb[0].mxu0
  %251 = vmatprep.mubr.f32.mxu0 0.0
  %252 = vmatmul.mubr.f32.gmra.mrb[0].mxu0 %v141
  %v253 = vpop.f32.mrb[0].mxu0
  %v254 = vadd.f32 %v175, %v253
  %v255 = vpop.f32.mrb[0].mxu0
  %256 = vmatprep.mubr.f32.mxu0 0.0
  %257 = vmatmul.mubr.f32.gmra.mrb[0].mxu0 %v147
  %v258 = vpop.f32.mrb[0].mxu0
  %v259 = vadd.f32 %v175, %v258
  %v260 = vpop.f32.mrb[0].mxu0
  %261 = vmatprep.mubr.f32.mxu0 0.0
  %262 = vmatmul.mubr.f32.gmra.mrb[0].mxu0 %v153
  %v263 = vpop.f32.mrb[0].mxu0
  %v264 = vadd.f32 %v175, %v263
  %v265 = vpop.f32.mrb[0].mxu0
  %266 = vdwg.mxu0
  %v267 = vadd.f32 %v244, 0.0
  %v268 = vsub.f32 %v267, %v126
  %vm269 = vcmp.gt.f32.partialorder %v268, 0.5
  %v270 = vsel %vm269, 1.0, 0.0
  %v271 = vmul.f32 %v268, 0.95
  %v272 = vadd.f32 %v271, %v249
  %v273 = vsel %vm269, 0.5, 0.0
  %v274 = vsub.f32 %v272, %v273
  %vm275 = vcmp.gt.f32.partialorder %v274, 0.5
  %v276 = vsel %vm275, 1.0, 0.0
  %v277 = vmul.f32 %v274, 0.95
  %v278 = vadd.f32 %v277, %v254
  %v279 = vsel %vm275, 0.5, 0.0
  %v280 = vsub.f32 %v278, %v279
  %vm281 = vcmp.gt.f32.partialorder %v280, 0.5
  %v282 = vsel %vm281, 1.0, 0.0
  %v283 = vmul.f32 %v280, 0.95
  %v284 = vadd.f32 %v283, %v259
  %v285 = vsel %vm281, 0.5, 0.0
  %v286 = vsub.f32 %v284, %v285
  %vm287 = vcmp.gt.f32.partialorder %v286, 0.5
  %v288 = vsel %vm287, 1.0, 0.0
  %v289 = vmul.f32 %v286, 0.95
  %v290 = vadd.f32 %v289, %v264
  %v291 = vsel %vm287, 0.5, 0.0
  %v292 = vsub.f32 %v290, %v291
  %vm293 = vcmp.gt.f32.partialorder %v292, 0.5
  %v294 = vsel %vm293, 1.0, 0.0
  %v295 = vld [vmem:[%s5] sm:$0xff]
  %v296 = vld [vmem:[%s5 + $0x8] sm:$0xff]
  %v297 = vld [vmem:[%s5 + $0x10] sm:$0xff]
  %v298 = vld [vmem:[%s5 + $0x18] sm:$0xff]
  %v299 = vld [vmem:[%s5 + $0x20] sm:$0xff]
  %v300 = vld [vmem:[%s5 + $0x28] sm:$0xff]
  %v301 = vld [vmem:[%s5 + $0x30] sm:$0xff]
  %v302 = vld [vmem:[%s5 + $0x38] sm:$0xff]
  %v303 = vld [vmem:[%s5 + $0x40] sm:$0xff]
  %v304 = vld [vmem:[%s5 + $0x48] sm:$0xff]
  %v305 = vld [vmem:[%s5 + $0x50] sm:$0xff]
  %v306 = vld [vmem:[%s5 + $0x58] sm:$0xff]
  %v307 = vld [vmem:[%s5 + $0x60] sm:$0xff]
  %v308 = vld [vmem:[%s5 + $0x68] sm:$0xff]
  %v309 = vld [vmem:[%s5 + $0x70] sm:$0xff]
  %v310 = vld [vmem:[%s5 + $0x78] sm:$0xff]
  %v311 = vld [vmem:[%s6] sm:$0x1]
  %v313 = vlaneseq
  %v314 = vshrl.u32 %v313, 7
  %v315 = vsub.s32 0, %v314
  %v316 = vrot.slane %v311, %v315
  %318 = vmatprep.subr.mxu0 0.0
  %319 = vmatpush1.msra.mxu0 %v295
  %320 = vmatprep.subr.mxu0 0.0
  %321 = vmatpush1.msra.mxu0 %v296
  %322 = vmatprep.subr.mxu0 0.0
  %323 = vmatpush1.msra.mxu0 %v297
  %324 = vmatprep.subr.mxu0 0.0
  %325 = vmatpush1.msra.mxu0 %v298
  %326 = vmatprep.subr.mxu0 0.0
  %327 = vmatpush1.msra.mxu0 %v299
  %328 = vmatprep.subr.mxu0 0.0
  %329 = vmatpush1.msra.mxu0 %v300
  %330 = vmatprep.subr.mxu0 0.0
  %331 = vmatpush1.msra.mxu0 %v301
  %332 = vmatprep.subr.mxu0 0.0
  %333 = vmatpush1.msra.mxu0 %v302
  %334 = vmatprep.subr.mxu0 0.0
  %335 = vmatpush1.msra.mxu0 %v303
  %336 = vmatprep.subr.mxu0 0.0
  %337 = vmatpush1.msra.mxu0 %v304
  %338 = vmatprep.subr.mxu0 0.0
  %339 = vmatpush1.msra.mxu0 %v305
  %340 = vmatprep.subr.mxu0 0.0
  %341 = vmatpush1.msra.mxu0 %v306
  %342 = vmatprep.subr.mxu0 0.0
  %343 = vmatpush1.msra.mxu0 %v307
  %344 = vmatprep.subr.mxu0 0.0
  %345 = vmatpush1.msra.mxu0 %v308
  %346 = vmatprep.subr.mxu0 0.0
  %347 = vmatpush1.msra.mxu0 %v309
  %348 = vmatprep.subr.mxu0 0.0
  %349 = vmatpush1.msra.mxu0 %v310
  %350 = vmatprep.subr.mxu0 0.0
  %351 = vmatpush1.msra.mxu0 0.0
  %352 = vmatprep.subr.mxu0 0.0
  %353 = vmatpush1.msra.mxu0 0.0
  %354 = vmatprep.subr.mxu0 0.0
  %355 = vmatpush1.msra.mxu0 0.0
  %356 = vmatprep.subr.mxu0 0.0
  %357 = vmatpush1.msra.mxu0 0.0
  %358 = vmatprep.subr.mxu0 0.0
  %359 = vmatpush1.msra.mxu0 0.0
  %360 = vmatprep.subr.mxu0 0.0
  %361 = vmatpush1.msra.mxu0 0.0
  %362 = vmatprep.subr.mxu0 0.0
  %363 = vmatpush1.msra.mxu0 0.0
  %364 = vmatprep.subr.mxu0 0.0
  %365 = vmatpush1.msra.mxu0 0.0
  %366 = vmatprep.subr.mxu0 0.0
  %367 = vmatpush1.msra.mxu0 0.0
  %368 = vmatprep.subr.mxu0 0.0
  %369 = vmatpush1.msra.mxu0 0.0
  %370 = vmatprep.subr.mxu0 0.0
  %371 = vmatpush1.msra.mxu0 0.0
  %372 = vmatprep.subr.mxu0 0.0
  %373 = vmatpush1.msra.mxu0 0.0
  %374 = vmatprep.subr.mxu0 0.0
  %375 = vmatpush1.msra.mxu0 0.0
  %376 = vmatprep.subr.mxu0 0.0
  %377 = vmatpush1.msra.mxu0 0.0
  %378 = vmatprep.subr.mxu0 0.0
  %379 = vmatpush1.msra.mxu0 0.0
  %380 = vmatprep.subr.mxu0 0.0
  %381 = vmatpush1.msra.mxu0 0.0
  %382 = vmatprep.mubr.f32.mxu0 0.0
  %383 = vmatmul.mubr.f32.gmra.mrb[0].mxu0 %v270
  %v384 = vpop.f32.mrb[0].mxu0
  %v385 = vadd.f32 %v316, %v384
  %v386 = vpop.f32.mrb[0].mxu0
  %387 = vmatprep.mubr.f32.mxu0 0.0
  %388 = vmatmul.mubr.f32.gmra.mrb[0].mxu0 %v276
  %v389 = vpop.f32.mrb[0].mxu0
  %v390 = vadd.f32 %v316, %v389
  %v391 = vpop.f32.mrb[0].mxu0
  %392 = vmatprep.mubr.f32.mxu0 0.0
  %393 = vmatmul.mubr.f32.gmra.mrb[0].mxu0 %v282
  %v394 = vpop.f32.mrb[0].mxu0
  %v395 = vadd.f32 %v316, %v394
  %v396 = vpop.f32.mrb[0].mxu0
  %397 = vmatprep.mubr.f32.mxu0 0.0
  %398 = vmatmul.mubr.f32.gmra.mrb[0].mxu0 %v288
  %v399 = vpop.f32.mrb[0].mxu0
  %v400 = vadd.f32 %v316, %v399
  %v401 = vpop.f32.mrb[0].mxu0
  %402 = vmatprep.mubr.f32.mxu0 0.0
  %403 = vmatmul.mubr.f32.gmra.mrb[0].mxu0 %v294
  %v404 = vpop.f32.mrb[0].mxu0
  %v405 = vadd.f32 %v316, %v404
  %v406 = vpop.f32.mrb[0].mxu0
  %407 = vdwg.mxu0
  %v408 = vadd.f32 %v385, 0.0
  %v409 = vsub.f32 %v408, %v126
  %vm410 = vcmp.gt.f32.partialorder %v409, 0.5
  %v411 = vsel %vm410, 1.0, 0.0
  %v412 = vmul.f32 %v409, 0.95
  %v413 = vadd.f32 %v412, %v390
  %v414 = vsel %vm410, 0.5, 0.0
  %v415 = vsub.f32 %v413, %v414
  %vm416 = vcmp.gt.f32.partialorder %v415, 0.5
  %v417 = vsel %vm416, 1.0, 0.0
  %v418 = vmul.f32 %v415, 0.95
  %v419 = vadd.f32 %v418, %v395
  %v420 = vsel %vm416, 0.5, 0.0
  %v421 = vsub.f32 %v419, %v420
  %vm422 = vcmp.gt.f32.partialorder %v421, 0.5
  %v423 = vsel %vm422, 1.0, 0.0
  %v424 = vmul.f32 %v421, 0.95
  %v425 = vadd.f32 %v424, %v400
  %v426 = vsel %vm422, 0.5, 0.0
  %v427 = vsub.f32 %v425, %v426
  %vm428 = vcmp.gt.f32.partialorder %v427, 0.5
  %v429 = vsel %vm428, 1.0, 0.0
  %v430 = vmul.f32 %v427, 0.95
  %v431 = vadd.f32 %v430, %v405
  %v432 = vsel %vm428, 0.5, 0.0
  %v433 = vsub.f32 %v431, %v432
  %vm434 = vcmp.gt.f32.partialorder %v433, 0.5
  %v435 = vsel %vm434, 1.0, 0.0
  %v436 = vld [vmem:[%s7] sm:$0xff]
  %v437 = vld [vmem:[%s7 + $0x8] sm:$0xff]
  %v438 = vld [vmem:[%s7 + $0x10] sm:$0xff]
  %v439 = vld [vmem:[%s7 + $0x18] sm:$0xff]
  %v440 = vld [vmem:[%s7 + $0x20] sm:$0xff]
  %v441 = vld [vmem:[%s7 + $0x28] sm:$0xff]
  %v442 = vld [vmem:[%s7 + $0x30] sm:$0xff]
  %v443 = vld [vmem:[%s7 + $0x38] sm:$0xff]
  %v444 = vld [vmem:[%s7 + $0x40] sm:$0xff]
  %v445 = vld [vmem:[%s7 + $0x48] sm:$0xff]
  %v446 = vld [vmem:[%s7 + $0x50] sm:$0xff]
  %v447 = vld [vmem:[%s7 + $0x58] sm:$0xff]
  %v448 = vld [vmem:[%s7 + $0x60] sm:$0xff]
  %v449 = vld [vmem:[%s7 + $0x68] sm:$0xff]
  %v450 = vld [vmem:[%s7 + $0x70] sm:$0xff]
  %v451 = vld [vmem:[%s7 + $0x78] sm:$0xff]
  %v452 = vld [vmem:[%s8] sm:$0x1]
  %v454 = vlaneseq
  %v455 = vshrl.u32 %v454, 7
  %v456 = vsub.s32 0, %v455
  %v457 = vrot.slane %v452, %v456
  %459 = vmatprep.subr.mxu0 0.0
  %460 = vmatpush1.msra.mxu0 %v436
  %461 = vmatprep.subr.mxu0 0.0
  %462 = vmatpush1.msra.mxu0 %v437
  %463 = vmatprep.subr.mxu0 0.0
  %464 = vmatpush1.msra.mxu0 %v438
  %465 = vmatprep.subr.mxu0 0.0
  %466 = vmatpush1.msra.mxu0 %v439
  %467 = vmatprep.subr.mxu0 0.0
  %468 = vmatpush1.msra.mxu0 %v440
  %469 = vmatprep.subr.mxu0 0.0
  %470 = vmatpush1.msra.mxu0 %v441
  %471 = vmatprep.subr.mxu0 0.0
  %472 = vmatpush1.msra.mxu0 %v442
  %473 = vmatprep.subr.mxu0 0.0
  %474 = vmatpush1.msra.mxu0 %v443
  %475 = vmatprep.subr.mxu0 0.0
  %476 = vmatpush1.msra.mxu0 %v444
  %477 = vmatprep.subr.mxu0 0.0
  %478 = vmatpush1.msra.mxu0 %v445
  %479 = vmatprep.subr.mxu0 0.0
  %480 = vmatpush1.msra.mxu0 %v446
  %481 = vmatprep.subr.mxu0 0.0
  %482 = vmatpush1.msra.mxu0 %v447
  %483 = vmatprep.subr.mxu0 0.0
  %484 = vmatpush1.msra.mxu0 %v448
  %485 = vmatprep.subr.mxu0 0.0
  %486 = vmatpush1.msra.mxu0 %v449
  %487 = vmatprep.subr.mxu0 0.0
  %488 = vmatpush1.msra.mxu0 %v450
  %489 = vmatprep.subr.mxu0 0.0
  %490 = vmatpush1.msra.mxu0 %v451
  %491 = vmatprep.subr.mxu0 0.0
  %492 = vmatpush1.msra.mxu0 0.0
  %493 = vmatprep.subr.mxu0 0.0
  %494 = vmatpush1.msra.mxu0 0.0
  %495 = vmatprep.subr.mxu0 0.0
  %496 = vmatpush1.msra.mxu0 0.0
  %497 = vmatprep.subr.mxu0 0.0
  %498 = vmatpush1.msra.mxu0 0.0
  %499 = vmatprep.subr.mxu0 0.0
  %500 = vmatpush1.msra.mxu0 0.0
  %501 = vmatprep.subr.mxu0 0.0
  %502 = vmatpush1.msra.mxu0 0.0
  %503 = vmatprep.subr.mxu0 0.0
  %504 = vmatpush1.msra.mxu0 0.0
  %505 = vmatprep.subr.mxu0 0.0
  %506 = vmatpush1.msra.mxu0 0.0
  %507 = vmatprep.subr.mxu0 0.0
  %508 = vmatpush1.msra.mxu0 0.0
  %509 = vmatprep.subr.mxu0 0.0
  %510 = vmatpush1.msra.mxu0 0.0
  %511 = vmatprep.subr.mxu0 0.0
  %512 = vmatpush1.msra.mxu0 0.0
  %513 = vmatprep.subr.mxu0 0.0
  %514 = vmatpush1.msra.mxu0 0.0
  %515 = vmatprep.subr.mxu0 0.0
  %516 = vmatpush1.msra.mxu0 0.0
  %517 = vmatprep.subr.mxu0 0.0
  %518 = vmatpush1.msra.mxu0 0.0
  %519 = vmatprep.subr.mxu0 0.0
  %520 = vmatpush1.msra.mxu0 0.0
  %521 = vmatprep.subr.mxu0 0.0
  %522 = vmatpush1.msra.mxu0 0.0
  %523 = vmatprep.mubr.f32.mxu0 0.0
  %524 = vmatmul.mubr.f32.gmra.mrb[0].mxu0 %v411
  %v525 = vpop.f32.mrb[0].mxu0
  %v526 = vadd.f32 %v457, %v525
  %v527 = vpop.f32.mrb[0].mxu0
  %528 = vmatprep.mubr.f32.mxu0 0.0
  %529 = vmatmul.mubr.f32.gmra.mrb[0].mxu0 %v417
  %v530 = vpop.f32.mrb[0].mxu0
  %v531 = vadd.f32 %v457, %v530
  %v532 = vpop.f32.mrb[0].mxu0
  %533 = vmatprep.mubr.f32.mxu0 0.0
  %534 = vmatmul.mubr.f32.gmra.mrb[0].mxu0 %v423
  %v535 = vpop.f32.mrb[0].mxu0
  %v536 = vadd.f32 %v457, %v535
  %v537 = vpop.f32.mrb[0].mxu0
  %538 = vmatprep.mubr.f32.mxu0 0.0
  %539 = vmatmul.mubr.f32.gmra.mrb[0].mxu0 %v429
  %v540 = vpop.f32.mrb[0].mxu0
  %v541 = vadd.f32 %v457, %v540
  %v542 = vpop.f32.mrb[0].mxu0
  %543 = vmatprep.mubr.f32.mxu0 0.0
  %544 = vmatmul.mubr.f32.gmra.mrb[0].mxu0 %v435
  %v545 = vpop.f32.mrb[0].mxu0
  %v546 = vadd.f32 %v457, %v545
  %v547 = vpop.f32.mrb[0].mxu0
  %548 = vdwg.mxu0
  %v549 = vadd.f32 %v526, 0.0
  %v550 = vsub.f32 %v549, %v126
  %vm551 = vcmp.gt.f32.partialorder %v550, 0.5
  %v552 = vsel %vm551, 1.0, 0.0
  %v553 = vmul.f32 %v550, 0.95
  %v554 = vadd.f32 %v553, %v531
  %v555 = vsel %vm551, 0.5, 0.0
  %v556 = vsub.f32 %v554, %v555
  %vm557 = vcmp.gt.f32.partialorder %v556, 0.5
  %v558 = vsel %vm557, 1.0, 0.0
  %v559 = vmul.f32 %v556, 0.95
  %v560 = vadd.f32 %v559, %v536
  %v561 = vsel %vm557, 0.5, 0.0
  %v562 = vsub.f32 %v560, %v561
  %vm563 = vcmp.gt.f32.partialorder %v562, 0.5
  %v564 = vsel %vm563, 1.0, 0.0
  %v565 = vmul.f32 %v562, 0.95
  %v566 = vadd.f32 %v565, %v541
  %v567 = vsel %vm563, 0.5, 0.0
  %v568 = vsub.f32 %v566, %v567
  %vm569 = vcmp.gt.f32.partialorder %v568, 0.5
  %v570 = vsel %vm569, 1.0, 0.0
  %v571 = vmul.f32 %v568, 0.95
  %v572 = vadd.f32 %v571, %v546
  %v573 = vsel %vm569, 0.5, 0.0
  %v574 = vsub.f32 %v572, %v573
  %vm575 = vcmp.gt.f32.partialorder %v574, 0.5
  %v576 = vsel %vm575, 1.0, 0.0
  %v577 = vld [vmem:[%s9] sm:$0xff]
  %v578 = vld [vmem:[%s9 + $0x8] sm:$0xff]
  %v579 = vld [vmem:[%s9 + $0x10] sm:$0xff]
  %v580 = vld [vmem:[%s9 + $0x18] sm:$0xff]
  %v581 = vld [vmem:[%s9 + $0x20] sm:$0xff]
  %v582 = vld [vmem:[%s9 + $0x28] sm:$0xff]
  %v583 = vld [vmem:[%s9 + $0x30] sm:$0xff]
  %v584 = vld [vmem:[%s9 + $0x38] sm:$0xff]
  %v585 = vld [vmem:[%s9 + $0x40] sm:$0xff]
  %v586 = vld [vmem:[%s9 + $0x48] sm:$0xff]
  %v587 = vld [vmem:[%s9 + $0x50] sm:$0xff]
  %v588 = vld [vmem:[%s9 + $0x58] sm:$0xff]
  %v589 = vld [vmem:[%s9 + $0x60] sm:$0xff]
  %v590 = vld [vmem:[%s9 + $0x68] sm:$0xff]
  %v591 = vld [vmem:[%s9 + $0x70] sm:$0xff]
  %v592 = vld [vmem:[%s9 + $0x78] sm:$0xff]
  %v593 = vld [vmem:[%s10] sm:$0x1]
  %v595 = vlaneseq
  %v596 = vshrl.u32 %v595, 7
  %v597 = vsub.s32 0, %v596
  %v598 = vrot.slane %v593, %v597
  %600 = vmatprep.subr.mxu0 0.0
  %601 = vmatpush1.msra.mxu0 %v577
  %602 = vmatprep.subr.mxu0 0.0
  %603 = vmatpush1.msra.mxu0 %v578
  %604 = vmatprep.subr.mxu0 0.0
  %605 = vmatpush1.msra.mxu0 %v579
  %606 = vmatprep.subr.mxu0 0.0
  %607 = vmatpush1.msra.mxu0 %v580
  %608 = vmatprep.subr.mxu0 0.0
  %609 = vmatpush1.msra.mxu0 %v581
  %610 = vmatprep.subr.mxu0 0.0
  %611 = vmatpush1.msra.mxu0 %v582
  %612 = vmatprep.subr.mxu0 0.0
  %613 = vmatpush1.msra.mxu0 %v583
  %614 = vmatprep.subr.mxu0 0.0
  %615 = vmatpush1.msra.mxu0 %v584
  %616 = vmatprep.subr.mxu0 0.0
  %617 = vmatpush1.msra.mxu0 %v585
  %618 = vmatprep.subr.mxu0 0.0
  %619 = vmatpush1.msra.mxu0 %v586
  %620 = vmatprep.subr.mxu0 0.0
  %621 = vmatpush1.msra.mxu0 %v587
  %622 = vmatprep.subr.mxu0 0.0
  %623 = vmatpush1.msra.mxu0 %v588
  %624 = vmatprep.subr.mxu0 0.0
  %625 = vmatpush1.msra.mxu0 %v589
  %626 = vmatprep.subr.mxu0 0.0
  %627 = vmatpush1.msra.mxu0 %v590
  %628 = vmatprep.subr.mxu0 0.0
  %629 = vmatpush1.msra.mxu0 %v591
  %630 = vmatprep.subr.mxu0 0.0
  %631 = vmatpush1.msra.mxu0 %v592
  %632 = vmatprep.subr.mxu0 0.0
  %633 = vmatpush1.msra.mxu0 0.0
  %634 = vmatprep.subr.mxu0 0.0
  %635 = vmatpush1.msra.mxu0 0.0
  %636 = vmatprep.subr.mxu0 0.0
  %637 = vmatpush1.msra.mxu0 0.0
  %638 = vmatprep.subr.mxu0 0.0
  %639 = vmatpush1.msra.mxu0 0.0
  %640 = vmatprep.subr.mxu0 0.0
  %641 = vmatpush1.msra.mxu0 0.0
  %642 = vmatprep.subr.mxu0 0.0
  %643 = vmatpush1.msra.mxu0 0.0
  %644 = vmatprep.subr.mxu0 0.0
  %645 = vmatpush1.msra.mxu0 0.0
  %646 = vmatprep.subr.mxu0 0.0
  %647 = vmatpush1.msra.mxu0 0.0
  %648 = vmatprep.subr.mxu0 0.0
  %649 = vmatpush1.msra.mxu0 0.0
  %650 = vmatprep.subr.mxu0 0.0
  %651 = vmatpush1.msra.mxu0 0.0
  %652 = vmatprep.subr.mxu0 0.0
  %653 = vmatpush1.msra.mxu0 0.0
  %654 = vmatprep.subr.mxu0 0.0
  %655 = vmatpush1.msra.mxu0 0.0
  %656 = vmatprep.subr.mxu0 0.0
  %657 = vmatpush1.msra.mxu0 0.0
  %658 = vmatprep.subr.mxu0 0.0
  %659 = vmatpush1.msra.mxu0 0.0
  %660 = vmatprep.subr.mxu0 0.0
  %661 = vmatpush1.msra.mxu0 0.0
  %662 = vmatprep.subr.mxu0 0.0
  %663 = vmatpush1.msra.mxu0 0.0
  %664 = vmatprep.mubr.f32.mxu0 0.0
  %665 = vmatmul.mubr.f32.gmra.mrb[0].mxu0 %v552
  %v666 = vpop.f32.mrb[0].mxu0
  %v667 = vadd.f32 %v598, %v666
  %v668 = vpop.f32.mrb[0].mxu0
  %669 = vmatprep.mubr.f32.mxu0 0.0
  %670 = vmatmul.mubr.f32.gmra.mrb[0].mxu0 %v558
  %v671 = vpop.f32.mrb[0].mxu0
  %v672 = vadd.f32 %v598, %v671
  %v673 = vpop.f32.mrb[0].mxu0
  %674 = vmatprep.mubr.f32.mxu0 0.0
  %675 = vmatmul.mubr.f32.gmra.mrb[0].mxu0 %v564
  %v676 = vpop.f32.mrb[0].mxu0
  %v677 = vadd.f32 %v598, %v676
  %v678 = vpop.f32.mrb[0].mxu0
  %679 = vmatprep.mubr.f32.mxu0 0.0
  %680 = vmatmul.mubr.f32.gmra.mrb[0].mxu0 %v570
  %v681 = vpop.f32.mrb[0].mxu0
  %v682 = vadd.f32 %v598, %v681
  %v683 = vpop.f32.mrb[0].mxu0
  %684 = vmatprep.mubr.f32.mxu0 0.0
  %685 = vmatmul.mubr.f32.gmra.mrb[0].mxu0 %v576
  %v686 = vpop.f32.mrb[0].mxu0
  %v687 = vadd.f32 %v598, %v686
  %v688 = vpop.f32.mrb[0].mxu0
  %689 = vdwg.mxu0
  %v690 = vadd.f32 %v667, 0.0
  %v691 = vsub.f32 %v690, %v126
  %vm692 = vcmp.gt.f32.partialorder %v691, 0.5
  %v693 = vsel %vm692, 1.0, 0.0
  %v694 = vmul.f32 %v691, 0.95
  %v695 = vadd.f32 %v694, %v672
  %v696 = vsel %vm692, 0.5, 0.0
  %v697 = vsub.f32 %v695, %v696
  %vm698 = vcmp.gt.f32.partialorder %v697, 0.5
  %v699 = vsel %vm698, 1.0, 0.0
  %v700 = vmul.f32 %v697, 0.95
  %v701 = vadd.f32 %v700, %v677
  %v702 = vsel %vm698, 0.5, 0.0
  %v703 = vsub.f32 %v701, %v702
  %vm704 = vcmp.gt.f32.partialorder %v703, 0.5
  %v705 = vsel %vm704, 1.0, 0.0
  %v706 = vmul.f32 %v703, 0.95
  %v707 = vadd.f32 %v706, %v682
  %v708 = vsel %vm704, 0.5, 0.0
  %v709 = vsub.f32 %v707, %v708
  %vm710 = vcmp.gt.f32.partialorder %v709, 0.5
  %v711 = vsel %vm710, 1.0, 0.0
  %v712 = vmul.f32 %v709, 0.95
  %v713 = vadd.f32 %v712, %v687
  %v714 = vsel %vm710, 0.5, 0.0
  %v715 = vsub.f32 %v713, %v714
  %vm716 = vcmp.gt.f32.partialorder %v715, 0.5
  %v717 = vsel %vm716, 1.0, 0.0
  %718 = vst [vmem:[%s11] sm:$0xff] %v693
  %719 = vst [vmem:[%s11 + $0x8] sm:$0xff] %v691
  %s720 = scalar_lea.vmem %s11, 16
  %721 = vst [vmem:[%s720] sm:$0xff] %v699
  %722 = vst [vmem:[%s720 + $0x8] sm:$0xff] %v697
  %s723 = scalar_lea.vmem %s11, 32
  %724 = vst [vmem:[%s723] sm:$0xff] %v705
  %725 = vst [vmem:[%s723 + $0x8] sm:$0xff] %v703
  %s726 = scalar_lea.vmem %s11, 48
  %727 = vst [vmem:[%s726] sm:$0xff] %v711
  %728 = vst [vmem:[%s726 + $0x8] sm:$0xff] %v709
  %s729 = scalar_lea.vmem %s11, 64
  %730 = vst [vmem:[%s729] sm:$0xff] %v717
  %731 = vst [vmem:[%s729 + $0x8] sm:$0xff] %v715
  // Predicated region
  $region46: #{deep_snn_forward.1} parent=0 // pred_check
    _
  $region47: #{deep_snn_forward.1} parent=0 // pred_check_branch
    %733 = sbr.rel (0) target = $region49
  $region48: #{deep_snn_forward.1} parent=0 // pred_region
    _
  $region49: #{deep_snn_forward.1} parent=0 // pred_fallthru
    _
  // Predicated region
  $region50: #{deep_snn_forward.1} parent=0 // pred_check
    _
  $region51: #{deep_snn_forward.1} parent=0 // pred_check_branch
    %735 = sbr.rel (0) target = $region53
  $region52: #{deep_snn_forward.1} parent=0 // pred_region
    _
  $region53: #{deep_snn_forward.1} parent=0 // pred_fallthru
    _

</llo_original>
